<compile_context>
chip_gen: v6e
topology: v6e:2x2x1
jax: 0.10.0
libtpu: 0.0.40
codegen_flags: <defaults>
</compile_context>

<pallas_src>
import jax
import jax.numpy as jnp
from jax import lax
from jax.experimental import pallas as pl
from jax.experimental.pallas import tpu as pltpu


# ---------------- fused Pallas kernel (hot path) ----------------

def _value_head_kernel(x_ref, wc_ref, vec_ref, w1_hbm, o_ref, w1_vmem, sem):
    # x_ref   : [B, C_in, HW]        contiguous reshape of NCHW (no transpose)
    # wc_ref  : [C_out, C_in + 1]    1x1 conv weight with BN scale folded in;
    #                                last column is the folded BN shift.
    # vec_ref : [1, Vpad]            lane-dense concat of [b1 | w2 | b2 | pad]
    # w1_hbm  : [C_out, hidden, HW]  bf16 fc1 weight, left in HBM (pl.ANY)
    # o_ref   : [B, 1]               output
    # w1_vmem : VMEM scratch for w1 (bf16), sem: DMA completion semaphore
    B, C_in, HW = x_ref.shape
    C_out, hidden, _ = w1_vmem.shape

    # Kick off the dominant fc1-weight load now; overlap it with the conv path.
    w1_copy = pltpu.make_async_copy(w1_hbm, w1_vmem, sem)
    w1_copy.start()

    # ---- 1x1 conv (BN scale pre-folded) + BN shift + ReLU ----
    # Vectorized over (batch, channel, spatial) on the VPU: K = C_in = 4 is far
    # too small for the MXU.  Only C_in + 1 hoisted broadcasts, no scatter
    # stores, no flatten.
    x = x_ref[...]                                          # [B, C_in, HW] f32
    wc = wc_ref[...]                                        # [C_out, C_in+1] f32
    acc = wc[:, 0:1][None, :, :] * x[:, 0:1, :]             # [1,Co,1]*[B,1,HW]
    for c in range(1, C_in):                                # static -> unrolled
        acc = acc + wc[:, c:c + 1][None, :, :] * x[:, c:c + 1, :]
    shift = wc[:, C_in:C_in + 1][None, :, :]                # [1, C_out, 1]
    act = jnp.maximum(acc + shift, 0.0)                     # [B, C_out, HW] f32

    # ---- fc1: accumulate one small MXU matmul per conv channel against the
    # pre-reshaped w1 [C_out, hidden, HW] (lane-dense HW last dim).  This
    # matches PyTorch's channel-major view(B, -1) flatten order without ever
    # materializing the flat row.  bf16 operands, f32 accumulation.
    w1_copy.wait()                                          # w1 now in VMEM
    h = jnp.zeros((B, hidden), jnp.float32)
    for c in range(C_out):                                  # static -> unrolled
        a_c = act[:, c, :].astype(jnp.bfloat16)             # [B, HW]
        h = h + lax.dot_general(a_c, w1_vmem[c],            # [hidden, HW]
                                (((1,), (1,)), ((), ())),
                                preferred_element_type=jnp.float32)

    b1 = vec_ref[0:1, 0:hidden]                             # [1, hidden]
    w2 = vec_ref[0:1, hidden:2 * hidden]                    # [1, hidden]
    b2 = vec_ref[0:1, 2 * hidden:2 * hidden + 1]            # [1, 1]
    h = jnp.maximum(h + b1, 0.0)                            # fc1 bias + ReLU

    # fc2 (N == 1): VPU multiply + lane reduction beats a degenerate MXU op.
    y = jnp.sum(h * w2, axis=1, keepdims=True) + b2
    o_ref[...] = jnp.tanh(y)                                # [B, 1]


# ---------------- one-time weight preprocessing (hoisted out of forward) ----

def prepare_params(params, eps=1e-5):
    """Fold BN into the conv weight, reshape/cast weights. Run ONCE at load."""
    # TODO(synk): BatchNorm is implemented in eval (running-stats) semantics;
    # training-mode batch statistics / running-stat updates are not computed.
    f32 = jnp.float32
    wc = params["conv_w"].astype(f32)                       # [C_out, C_in]
    gamma = params["bn_gamma"].astype(f32)
    beta = params["bn_beta"].astype(f32)
    mean = params["bn_mean"].astype(f32)
    var = params["bn_var"].astype(f32)
    inv_std = 1.0 / jnp.sqrt(var + eps)
    scale = gamma * inv_std
    shift = beta - mean * scale
    # Fold BN scale directly into the conv weight; append the shift as an
    # extra column so conv weight + shift travel as one small input.
    wc_aug = jnp.concatenate([wc * scale[:, None], shift[:, None]], axis=1)

    C_out = wc.shape[0]
    w1 = params["fc1_w"].astype(f32)                        # [hidden, C_out*HW]
    hidden = w1.shape[0]
    HW = w1.shape[1] // C_out
    # [hidden, C_out*HW] -> [C_out, hidden, HW] bf16: per-channel lane-dense
    # slabs matching PyTorch's channel-major view(B, -1) flatten order.
    w1_3d = jnp.transpose(w1.reshape(hidden, C_out, HW), (1, 0, 2)).astype(jnp.bfloat16)

    # Consolidate the small vectors into one lane-dense array.
    b1 = params["fc1_b"].astype(f32)                        # [hidden]
    w2 = params["fc2_w"].astype(f32).reshape(-1)            # [hidden]
    b2 = params["fc2_b"].astype(f32).reshape(-1)            # [1]
    vlen = ((2 * hidden + 1 + 127) // 128) * 128
    vec = jnp.zeros((1, vlen), f32)
    vec = vec.at[0, 0:hidden].set(b1)
    vec = vec.at[0, hidden:2 * hidden].set(w2)
    vec = vec.at[0, 2 * hidden:2 * hidden + 1].set(b2)

    return {"wc_aug": wc_aug, "vec": vec, "w1": w1_3d}


# ---------------- forward wrapper ----------------

def _full(shape):
    # full-array block (block_shape == array shape is always legal on TPU)
    return pl.BlockSpec(shape, lambda i: (0,) * len(shape))


@jax.jit
def value_head_forward(x_nchw, p):
    B, C, H, W = x_nchw.shape
    HW = H * W
    # Pure contiguous reshape of NCHW (no transpose, no extra HBM layout pass).
    x3 = x_nchw.reshape(B, C, HW).astype(jnp.float32)

    wc_aug, vec, w1 = p["wc_aug"], p["vec"], p["w1"]

    # NOTE(scaling): at realistic batch sizes, grid over the batch axis with
    # dimension_semantics=("parallel",) so v7x's 2 TensorCores split the work,
    # budget tiles against v7x's 64 MiB VMEM (32 MiB default scoped limit, 2x
    # double-buffered w1 + per-step batch tiles), keep w1 in bf16 (fp8 on v7x
    # for more headroom; int8 only pays on v5e/v6e since the v7x MXU has no int
    # path), and only once M reaches ~128-256 rows does fc1 become a real MXU
    # problem.  At B=2 the whole problem is one tiny VMEM-resident tile, so a
    # single grid step is optimal.
    return pl.pallas_call(
        _value_head_kernel,
        grid=(1,),
        in_specs=[
            _full((B, C, HW)),
            _full(wc_aug.shape),
            _full(vec.shape),
            pl.BlockSpec(memory_space=pl.ANY),   # w1 stays in HBM; DMA'd manually
        ],
        out_specs=_full((B, 1)),
        out_shape=jax.ShapeDtypeStruct((B, 1), jnp.float32),
        scratch_shapes=[
            pltpu.VMEM(w1.shape, jnp.bfloat16),
            pltpu.SemaphoreType.DMA(()),
        ],
        compiler_params=pltpu.CompilerParams(
            dimension_semantics=("arbitrary",)),
    )(x3, wc_aug, vec, w1)


# ---------------- pure-JAX reference (mirrors the PyTorch module, f32) -------

def value_head_reference(x_nchw, params):
    eps = 1e-5
    B = x_nchw.shape[0]
    wc = params["conv_w"]
    y = jnp.einsum("bchw,oc->bohw", x_nchw, wc)                     # 1x1 conv, no bias
    g = params["bn_gamma"][None, :, None, None]
    b = params["bn_beta"][None, :, None, None]
    m = params["bn_mean"][None, :, None, None]
    v = params["bn_var"][None, :, None, None]
    y = (y - m) / jnp.sqrt(v + eps) * g + b                         # BatchNorm2d (eval)
    y = jnp.maximum(y, 0.0)                                         # ReLU
    y = y.reshape(B, -1)                                            # view(B, -1): channel-major
    h = jnp.maximum(y @ params["fc1_w"].T + params["fc1_b"], 0.0)   # fc1 + ReLU
    return jnp.tanh(h @ params["fc2_w"].T + params["fc2_b"])        # fc2 + tanh


# ---------------- main ----------------

if __name__ == "__main__":
    B, C_IN, H, W = 2, 4, 8, 8     # fc1 requires 8x8 spatial (32*8*8 inputs)
    HIDDEN = 32

    key = jax.random.PRNGKey(0)
    keys = jax.random.split(key, 9)

    params = {
        "conv_w": 0.1 * jax.random.normal(keys[0], (32, C_IN), jnp.float32),
        "bn_gamma": 1.0 + 0.05 * jax.random.normal(keys[1], (32,), jnp.float32),
        "bn_beta": 0.05 * jax.random.normal(keys[2], (32,), jnp.float32),
        "bn_mean": 0.05 * jax.random.normal(keys[3], (32,), jnp.float32),
        "bn_var": 1.0 + 0.1 * jax.nn.softplus(jax.random.normal(keys[4], (32,), jnp.float32)),
        "fc1_w": 0.05 * jax.random.normal(keys[5], (HIDDEN, 32 * H * W), jnp.float32),
        "fc1_b": 0.05 * jax.random.normal(keys[6], (HIDDEN,), jnp.float32),
        "fc2_w": 0.05 * jax.random.normal(keys[7], (1, HIDDEN), jnp.float32),
        "fc2_b": 0.05 * jax.random.normal(keys[8], (1,), jnp.float32),
    }

    x = jax.random.normal(jax.random.PRNGKey(1), (B, C_IN, H, W), jnp.float32)

    # One-time weight prep (BN fold, w1 reshape + bf16 cast), hoisted out of
    # the forward path.
    prepped = jax.block_until_ready(prepare_params(params))

    out = jax.block_until_ready(value_head_forward(x, prepped))
    ref = jax.block_until_ready(value_head_reference(x, params))

    assert out.shape == (B, 1), out.shape
    # w1 / fc1 activation are bf16 in the kernel (f32 accumulation); the f32
    # reference therefore needs a looser tolerance than before.
    assert jnp.allclose(out, ref, rtol=1e-2, atol=1e-2), (out, ref)
    print("KERNEL_OK")
</pallas_src>

<mosaic_0001>
module attributes {stable_mosaic.version = 11 : i64} {
  func.func @_value_head_kernel(%arg0: i32, %arg1: memref<2x4x64xf32, #tpu.memory_space<vmem>>, %arg2: memref<32x5xf32, #tpu.memory_space<vmem>>, %arg3: memref<1x128xf32, #tpu.memory_space<vmem>>, %arg4: memref<32x32x64xbf16, #tpu.memory_space<any>>, %arg5: memref<2x1xf32, #tpu.memory_space<vmem>>, %arg6: memref<32x32x64xbf16, #tpu.memory_space<vmem>>, %arg7: memref<!tpu.dma_semaphore, #tpu.memory_space<semaphore_mem>>) attributes {dimension_semantics = [#tpu.dimension_semantics<arbitrary>], iteration_bounds = array<i64: 1>, scalar_prefetch = 0 : i64, scratch_operands = 2 : i64, tpu.core_type = #tpu.core_type<tc>, window_params = [{pipeline_mode = #tpu.pipeline_mode<synchronous>, transform_indices = @transform_0, window_bounds = array<i64: 2, 4, 64>}, {pipeline_mode = #tpu.pipeline_mode<synchronous>, transform_indices = @transform_1, window_bounds = array<i64: 32, 5>}, {pipeline_mode = #tpu.pipeline_mode<synchronous>, transform_indices = @transform_2, window_bounds = array<i64: 1, 128>}, {}, {pipeline_mode = #tpu.pipeline_mode<synchronous>, transform_indices = @transform_4, window_bounds = array<i64: 2, 1>}]} {
    tpu.enqueue_dma source(%arg4 : memref<32x32x64xbf16, #tpu.memory_space<any>>) target(%arg6 : memref<32x32x64xbf16, #tpu.memory_space<vmem>>) target_semaphore(%arg7 : memref<!tpu.dma_semaphore, #tpu.memory_space<semaphore_mem>>)
    %c0 = arith.constant 0 : index
    %c0_0 = arith.constant 0 : index
    %c0_1 = arith.constant 0 : index
    %0 = vector.load %arg1[%c0, %c0_0, %c0_1] : memref<2x4x64xf32, #tpu.memory_space<vmem>>, vector<2x4x64xf32>
    %c0_2 = arith.constant 0 : index
    %c0_3 = arith.constant 0 : index
    %1 = vector.load %arg2[%c0_2, %c0_3] : memref<32x5xf32, #tpu.memory_space<vmem>>, vector<32x5xf32>
    %2 = vector.extract_strided_slice %1 {offsets = [0, 0], sizes = [32, 1], strides = [1, 1]} : vector<32x5xf32> to vector<32x1xf32>
    %3 = vector.shape_cast %2 : vector<32x1xf32> to vector<1x32x1xf32>
    %4 = vector.extract_strided_slice %0 {offsets = [0, 0, 0], sizes = [2, 1, 64], strides = [1, 1, 1]} : vector<2x4x64xf32> to vector<2x1x64xf32>
    %5 = vector.broadcast %3 : vector<1x32x1xf32> to vector<2x32x64xf32>
    %6 = vector.broadcast %4 : vector<2x1x64xf32> to vector<2x32x64xf32>
    %7 = arith.mulf %5, %6 : vector<2x32x64xf32>
    %8 = vector.extract_strided_slice %1 {offsets = [0, 1], sizes = [32, 1], strides = [1, 1]} : vector<32x5xf32> to vector<32x1xf32>
    %9 = vector.shape_cast %8 : vector<32x1xf32> to vector<1x32x1xf32>
    %10 = vector.extract_strided_slice %0 {offsets = [0, 1, 0], sizes = [2, 1, 64], strides = [1, 1, 1]} : vector<2x4x64xf32> to vector<2x1x64xf32>
    %11 = vector.broadcast %9 : vector<1x32x1xf32> to vector<2x32x64xf32>
    %12 = vector.broadcast %10 : vector<2x1x64xf32> to vector<2x32x64xf32>
    %13 = arith.mulf %11, %12 : vector<2x32x64xf32>
    %14 = arith.addf %7, %13 : vector<2x32x64xf32>
    %15 = vector.extract_strided_slice %1 {offsets = [0, 2], sizes = [32, 1], strides = [1, 1]} : vector<32x5xf32> to vector<32x1xf32>
    %16 = vector.shape_cast %15 : vector<32x1xf32> to vector<1x32x1xf32>
    %17 = vector.extract_strided_slice %0 {offsets = [0, 2, 0], sizes = [2, 1, 64], strides = [1, 1, 1]} : vector<2x4x64xf32> to vector<2x1x64xf32>
    %18 = vector.broadcast %16 : vector<1x32x1xf32> to vector<2x32x64xf32>
    %19 = vector.broadcast %17 : vector<2x1x64xf32> to vector<2x32x64xf32>
    %20 = arith.mulf %18, %19 : vector<2x32x64xf32>
    %21 = arith.addf %14, %20 : vector<2x32x64xf32>
    %22 = vector.extract_strided_slice %1 {offsets = [0, 3], sizes = [32, 1], strides = [1, 1]} : vector<32x5xf32> to vector<32x1xf32>
    %23 = vector.shape_cast %22 : vector<32x1xf32> to vector<1x32x1xf32>
    %24 = vector.extract_strided_slice %0 {offsets = [0, 3, 0], sizes = [2, 1, 64], strides = [1, 1, 1]} : vector<2x4x64xf32> to vector<2x1x64xf32>
    %25 = vector.broadcast %23 : vector<1x32x1xf32> to vector<2x32x64xf32>
    %26 = vector.broadcast %24 : vector<2x1x64xf32> to vector<2x32x64xf32>
    %27 = arith.mulf %25, %26 : vector<2x32x64xf32>
    %28 = arith.addf %21, %27 : vector<2x32x64xf32>
    %29 = vector.extract_strided_slice %1 {offsets = [0, 4], sizes = [32, 1], strides = [1, 1]} : vector<32x5xf32> to vector<32x1xf32>
    %30 = vector.shape_cast %29 : vector<32x1xf32> to vector<1x32x1xf32>
    %31 = vector.broadcast %30 : vector<1x32x1xf32> to vector<2x32x64xf32>
    %32 = arith.addf %28, %31 : vector<2x32x64xf32>
    %cst = arith.constant 0.000000e+00 : f32
    %33 = vector.broadcast %cst : f32 to vector<2x32x64xf32>
    %34 = arith.maximumf %32, %33 : vector<2x32x64xf32>
    tpu.wait_dma2 semaphore(%arg7 : memref<!tpu.dma_semaphore, #tpu.memory_space<semaphore_mem>>) src(%arg4 : memref<32x32x64xbf16, #tpu.memory_space<any>>) dst(%arg6 : memref<32x32x64xbf16, #tpu.memory_space<vmem>>)
    %cst_4 = arith.constant 0.000000e+00 : f32
    %35 = vector.broadcast %cst_4 : f32 to vector<2x32xf32>
    %36 = vector.extract_strided_slice %34 {offsets = [0, 0, 0], sizes = [2, 1, 64], strides = [1, 1, 1]} : vector<2x32x64xf32> to vector<2x1x64xf32>
    %37 = vector.shape_cast %36 : vector<2x1x64xf32> to vector<2x64xf32>
    %38 = arith.truncf %37 : vector<2x64xf32> to vector<2x64xbf16>
    %c0_5 = arith.constant 0 : index
    %c0_6 = arith.constant 0 : index
    %c0_7 = arith.constant 0 : index
    %39 = vector.load %arg6[%c0_5, %c0_6, %c0_7] : memref<32x32x64xbf16, #tpu.memory_space<vmem>>, vector<1x32x64xbf16>
    %40 = vector.shape_cast %39 : vector<1x32x64xbf16> to vector<32x64xbf16>
    %cst_8 = arith.constant dense<0.000000e+00> : vector<2x32xf32>
    %41 = tpu.matmul %38, %40, %cst_8 {dimension_numbers = #tpu.dot_dimension_numbers<[1], [1], [0], [0], [0, 0, 1, 0], [], []>} : vector<2x64xbf16>, vector<32x64xbf16>, vector<2x32xf32> -> vector<2x32xf32>
    %42 = arith.addf %35, %41 : vector<2x32xf32>
    %43 = vector.extract_strided_slice %34 {offsets = [0, 1, 0], sizes = [2, 1, 64], strides = [1, 1, 1]} : vector<2x32x64xf32> to vector<2x1x64xf32>
    %44 = vector.shape_cast %43 : vector<2x1x64xf32> to vector<2x64xf32>
    %45 = arith.truncf %44 : vector<2x64xf32> to vector<2x64xbf16>
    %c1 = arith.constant 1 : index
    %c0_9 = arith.constant 0 : index
    %c0_10 = arith.constant 0 : index
    %46 = vector.load %arg6[%c1, %c0_9, %c0_10] : memref<32x32x64xbf16, #tpu.memory_space<vmem>>, vector<1x32x64xbf16>
    %47 = vector.shape_cast %46 : vector<1x32x64xbf16> to vector<32x64xbf16>
    %cst_11 = arith.constant dense<0.000000e+00> : vector<2x32xf32>
    %48 = tpu.matmul %45, %47, %cst_11 {dimension_numbers = #tpu.dot_dimension_numbers<[1], [1], [0], [0], [0, 0, 1, 0], [], []>} : vector<2x64xbf16>, vector<32x64xbf16>, vector<2x32xf32> -> vector<2x32xf32>
    %49 = arith.addf %42, %48 : vector<2x32xf32>
    %50 = vector.extract_strided_slice %34 {offsets = [0, 2, 0], sizes = [2, 1, 64], strides = [1, 1, 1]} : vector<2x32x64xf32> to vector<2x1x64xf32>
    %51 = vector.shape_cast %50 : vector<2x1x64xf32> to vector<2x64xf32>
    %52 = arith.truncf %51 : vector<2x64xf32> to vector<2x64xbf16>
    %c2 = arith.constant 2 : index
    %c0_12 = arith.constant 0 : index
    %c0_13 = arith.constant 0 : index
    %53 = vector.load %arg6[%c2, %c0_12, %c0_13] : memref<32x32x64xbf16, #tpu.memory_space<vmem>>, vector<1x32x64xbf16>
    %54 = vector.shape_cast %53 : vector<1x32x64xbf16> to vector<32x64xbf16>
    %cst_14 = arith.constant dense<0.000000e+00> : vector<2x32xf32>
    %55 = tpu.matmul %52, %54, %cst_14 {dimension_numbers = #tpu.dot_dimension_numbers<[1], [1], [0], [0], [0, 0, 1, 0], [], []>} : vector<2x64xbf16>, vector<32x64xbf16>, vector<2x32xf32> -> vector<2x32xf32>
    %56 = arith.addf %49, %55 : vector<2x32xf32>
    %57 = vector.extract_strided_slice %34 {offsets = [0, 3, 0], sizes = [2, 1, 64], strides = [1, 1, 1]} : vector<2x32x64xf32> to vector<2x1x64xf32>
    %58 = vector.shape_cast %57 : vector<2x1x64xf32> to vector<2x64xf32>
    %59 = arith.truncf %58 : vector<2x64xf32> to vector<2x64xbf16>
    %c3 = arith.constant 3 : index
    %c0_15 = arith.constant 0 : index
    %c0_16 = arith.constant 0 : index
    %60 = vector.load %arg6[%c3, %c0_15, %c0_16] : memref<32x32x64xbf16, #tpu.memory_space<vmem>>, vector<1x32x64xbf16>
    %61 = vector.shape_cast %60 : vector<1x32x64xbf16> to vector<32x64xbf16>
    %cst_17 = arith.constant dense<0.000000e+00> : vector<2x32xf32>
    %62 = tpu.matmul %59, %61, %cst_17 {dimension_numbers = #tpu.dot_dimension_numbers<[1], [1], [0], [0], [0, 0, 1, 0], [], []>} : vector<2x64xbf16>, vector<32x64xbf16>, vector<2x32xf32> -> vector<2x32xf32>
    %63 = arith.addf %56, %62 : vector<2x32xf32>
    %64 = vector.extract_strided_slice %34 {offsets = [0, 4, 0], sizes = [2, 1, 64], strides = [1, 1, 1]} : vector<2x32x64xf32> to vector<2x1x64xf32>
    %65 = vector.shape_cast %64 : vector<2x1x64xf32> to vector<2x64xf32>
    %66 = arith.truncf %65 : vector<2x64xf32> to vector<2x64xbf16>
    %c4 = arith.constant 4 : index
    %c0_18 = arith.constant 0 : index
    %c0_19 = arith.constant 0 : index
    %67 = vector.load %arg6[%c4, %c0_18, %c0_19] : memref<32x32x64xbf16, #tpu.memory_space<vmem>>, vector<1x32x64xbf16>
    %68 = vector.shape_cast %67 : vector<1x32x64xbf16> to vector<32x64xbf16>
    %cst_20 = arith.constant dense<0.000000e+00> : vector<2x32xf32>
    %69 = tpu.matmul %66, %68, %cst_20 {dimension_numbers = #tpu.dot_dimension_numbers<[1], [1], [0], [0], [0, 0, 1, 0], [], []>} : vector<2x64xbf16>, vector<32x64xbf16>, vector<2x32xf32> -> vector<2x32xf32>
    %70 = arith.addf %63, %69 : vector<2x32xf32>
    %71 = vector.extract_strided_slice %34 {offsets = [0, 5, 0], sizes = [2, 1, 64], strides = [1, 1, 1]} : vector<2x32x64xf32> to vector<2x1x64xf32>
    %72 = vector.shape_cast %71 : vector<2x1x64xf32> to vector<2x64xf32>
    %73 = arith.truncf %72 : vector<2x64xf32> to vector<2x64xbf16>
    %c5 = arith.constant 5 : index
    %c0_21 = arith.constant 0 : index
    %c0_22 = arith.constant 0 : index
    %74 = vector.load %arg6[%c5, %c0_21, %c0_22] : memref<32x32x64xbf16, #tpu.memory_space<vmem>>, vector<1x32x64xbf16>
    %75 = vector.shape_cast %74 : vector<1x32x64xbf16> to vector<32x64xbf16>
    %cst_23 = arith.constant dense<0.000000e+00> : vector<2x32xf32>
    %76 = tpu.matmul %73, %75, %cst_23 {dimension_numbers = #tpu.dot_dimension_numbers<[1], [1], [0], [0], [0, 0, 1, 0], [], []>} : vector<2x64xbf16>, vector<32x64xbf16>, vector<2x32xf32> -> vector<2x32xf32>
    %77 = arith.addf %70, %76 : vector<2x32xf32>
    %78 = vector.extract_strided_slice %34 {offsets = [0, 6, 0], sizes = [2, 1, 64], strides = [1, 1, 1]} : vector<2x32x64xf32> to vector<2x1x64xf32>
    %79 = vector.shape_cast %78 : vector<2x1x64xf32> to vector<2x64xf32>
    %80 = arith.truncf %79 : vector<2x64xf32> to vector<2x64xbf16>
    %c6 = arith.constant 6 : index
    %c0_24 = arith.constant 0 : index
    %c0_25 = arith.constant 0 : index
    %81 = vector.load %arg6[%c6, %c0_24, %c0_25] : memref<32x32x64xbf16, #tpu.memory_space<vmem>>, vector<1x32x64xbf16>
    %82 = vector.shape_cast %81 : vector<1x32x64xbf16> to vector<32x64xbf16>
    %cst_26 = arith.constant dense<0.000000e+00> : vector<2x32xf32>
    %83 = tpu.matmul %80, %82, %cst_26 {dimension_numbers = #tpu.dot_dimension_numbers<[1], [1], [0], [0], [0, 0, 1, 0], [], []>} : vector<2x64xbf16>, vector<32x64xbf16>, vector<2x32xf32> -> vector<2x32xf32>
    %84 = arith.addf %77, %83 : vector<2x32xf32>
    %85 = vector.extract_strided_slice %34 {offsets = [0, 7, 0], sizes = [2, 1, 64], strides = [1, 1, 1]} : vector<2x32x64xf32> to vector<2x1x64xf32>
    %86 = vector.shape_cast %85 : vector<2x1x64xf32> to vector<2x64xf32>
    %87 = arith.truncf %86 : vector<2x64xf32> to vector<2x64xbf16>
    %c7 = arith.constant 7 : index
    %c0_27 = arith.constant 0 : index
    %c0_28 = arith.constant 0 : index
    %88 = vector.load %arg6[%c7, %c0_27, %c0_28] : memref<32x32x64xbf16, #tpu.memory_space<vmem>>, vector<1x32x64xbf16>
    %89 = vector.shape_cast %88 : vector<1x32x64xbf16> to vector<32x64xbf16>
    %cst_29 = arith.constant dense<0.000000e+00> : vector<2x32xf32>
    %90 = tpu.matmul %87, %89, %cst_29 {dimension_numbers = #tpu.dot_dimension_numbers<[1], [1], [0], [0], [0, 0, 1, 0], [], []>} : vector<2x64xbf16>, vector<32x64xbf16>, vector<2x32xf32> -> vector<2x32xf32>
    %91 = arith.addf %84, %90 : vector<2x32xf32>
    %92 = vector.extract_strided_slice %34 {offsets = [0, 8, 0], sizes = [2, 1, 64], strides = [1, 1, 1]} : vector<2x32x64xf32> to vector<2x1x64xf32>
    %93 = vector.shape_cast %92 : vector<2x1x64xf32> to vector<2x64xf32>
    %94 = arith.truncf %93 : vector<2x64xf32> to vector<2x64xbf16>
    %c8 = arith.constant 8 : index
    %c0_30 = arith.constant 0 : index
    %c0_31 = arith.constant 0 : index
    %95 = vector.load %arg6[%c8, %c0_30, %c0_31] : memref<32x32x64xbf16, #tpu.memory_space<vmem>>, vector<1x32x64xbf16>
    %96 = vector.shape_cast %95 : vector<1x32x64xbf16> to vector<32x64xbf16>
    %cst_32 = arith.constant dense<0.000000e+00> : vector<2x32xf32>
    %97 = tpu.matmul %94, %96, %cst_32 {dimension_numbers = #tpu.dot_dimension_numbers<[1], [1], [0], [0], [0, 0, 1, 0], [], []>} : vector<2x64xbf16>, vector<32x64xbf16>, vector<2x32xf32> -> vector<2x32xf32>
    %98 = arith.addf %91, %97 : vector<2x32xf32>
    %99 = vector.extract_strided_slice %34 {offsets = [0, 9, 0], sizes = [2, 1, 64], strides = [1, 1, 1]} : vector<2x32x64xf32> to vector<2x1x64xf32>
    %100 = vector.shape_cast %99 : vector<2x1x64xf32> to vector<2x64xf32>
    %101 = arith.truncf %100 : vector<2x64xf32> to vector<2x64xbf16>
    %c9 = arith.constant 9 : index
    %c0_33 = arith.constant 0 : index
    %c0_34 = arith.constant 0 : index
    %102 = vector.load %arg6[%c9, %c0_33, %c0_34] : memref<32x32x64xbf16, #tpu.memory_space<vmem>>, vector<1x32x64xbf16>
    %103 = vector.shape_cast %102 : vector<1x32x64xbf16> to vector<32x64xbf16>
    %cst_35 = arith.constant dense<0.000000e+00> : vector<2x32xf32>
    %104 = tpu.matmul %101, %103, %cst_35 {dimension_numbers = #tpu.dot_dimension_numbers<[1], [1], [0], [0], [0, 0, 1, 0], [], []>} : vector<2x64xbf16>, vector<32x64xbf16>, vector<2x32xf32> -> vector<2x32xf32>
    %105 = arith.addf %98, %104 : vector<2x32xf32>
    %106 = vector.extract_strided_slice %34 {offsets = [0, 10, 0], sizes = [2, 1, 64], strides = [1, 1, 1]} : vector<2x32x64xf32> to vector<2x1x64xf32>
    %107 = vector.shape_cast %106 : vector<2x1x64xf32> to vector<2x64xf32>
    %108 = arith.truncf %107 : vector<2x64xf32> to vector<2x64xbf16>
    %c10 = arith.constant 10 : index
    %c0_36 = arith.constant 0 : index
    %c0_37 = arith.constant 0 : index
    %109 = vector.load %arg6[%c10, %c0_36, %c0_37] : memref<32x32x64xbf16, #tpu.memory_space<vmem>>, vector<1x32x64xbf16>
    %110 = vector.shape_cast %109 : vector<1x32x64xbf16> to vector<32x64xbf16>
    %cst_38 = arith.constant dense<0.000000e+00> : vector<2x32xf32>
    %111 = tpu.matmul %108, %110, %cst_38 {dimension_numbers = #tpu.dot_dimension_numbers<[1], [1], [0], [0], [0, 0, 1, 0], [], []>} : vector<2x64xbf16>, vector<32x64xbf16>, vector<2x32xf32> -> vector<2x32xf32>
    %112 = arith.addf %105, %111 : vector<2x32xf32>
    %113 = vector.extract_strided_slice %34 {offsets = [0, 11, 0], sizes = [2, 1, 64], strides = [1, 1, 1]} : vector<2x32x64xf32> to vector<2x1x64xf32>
    %114 = vector.shape_cast %113 : vector<2x1x64xf32> to vector<2x64xf32>
    %115 = arith.truncf %114 : vector<2x64xf32> to vector<2x64xbf16>
    %c11 = arith.constant 11 : index
    %c0_39 = arith.constant 0 : index
    %c0_40 = arith.constant 0 : index
    %116 = vector.load %arg6[%c11, %c0_39, %c0_40] : memref<32x32x64xbf16, #tpu.memory_space<vmem>>, vector<1x32x64xbf16>
    %117 = vector.shape_cast %116 : vector<1x32x64xbf16> to vector<32x64xbf16>
    %cst_41 = arith.constant dense<0.000000e+00> : vector<2x32xf32>
    %118 = tpu.matmul %115, %117, %cst_41 {dimension_numbers = #tpu.dot_dimension_numbers<[1], [1], [0], [0], [0, 0, 1, 0], [], []>} : vector<2x64xbf16>, vector<32x64xbf16>, vector<2x32xf32> -> vector<2x32xf32>
    %119 = arith.addf %112, %118 : vector<2x32xf32>
    %120 = vector.extract_strided_slice %34 {offsets = [0, 12, 0], sizes = [2, 1, 64], strides = [1, 1, 1]} : vector<2x32x64xf32> to vector<2x1x64xf32>
    %121 = vector.shape_cast %120 : vector<2x1x64xf32> to vector<2x64xf32>
    %122 = arith.truncf %121 : vector<2x64xf32> to vector<2x64xbf16>
    %c12 = arith.constant 12 : index
    %c0_42 = arith.constant 0 : index
    %c0_43 = arith.constant 0 : index
    %123 = vector.load %arg6[%c12, %c0_42, %c0_43] : memref<32x32x64xbf16, #tpu.memory_space<vmem>>, vector<1x32x64xbf16>
    %124 = vector.shape_cast %123 : vector<1x32x64xbf16> to vector<32x64xbf16>
    %cst_44 = arith.constant dense<0.000000e+00> : vector<2x32xf32>
    %125 = tpu.matmul %122, %124, %cst_44 {dimension_numbers = #tpu.dot_dimension_numbers<[1], [1], [0], [0], [0, 0, 1, 0], [], []>} : vector<2x64xbf16>, vector<32x64xbf16>, vector<2x32xf32> -> vector<2x32xf32>
    %126 = arith.addf %119, %125 : vector<2x32xf32>
    %127 = vector.extract_strided_slice %34 {offsets = [0, 13, 0], sizes = [2, 1, 64], strides = [1, 1, 1]} : vector<2x32x64xf32> to vector<2x1x64xf32>
    %128 = vector.shape_cast %127 : vector<2x1x64xf32> to vector<2x64xf32>
    %129 = arith.truncf %128 : vector<2x64xf32> to vector<2x64xbf16>
    %c13 = arith.constant 13 : index
    %c0_45 = arith.constant 0 : index
    %c0_46 = arith.constant 0 : index
    %130 = vector.load %arg6[%c13, %c0_45, %c0_46] : memref<32x32x64xbf16, #tpu.memory_space<vmem>>, vector<1x32x64xbf16>
    %131 = vector.shape_cast %130 : vector<1x32x64xbf16> to vector<32x64xbf16>
    %cst_47 = arith.constant dense<0.000000e+00> : vector<2x32xf32>
    %132 = tpu.matmul %129, %131, %cst_47 {dimension_numbers = #tpu.dot_dimension_numbers<[1], [1], [0], [0], [0, 0, 1, 0], [], []>} : vector<2x64xbf16>, vector<32x64xbf16>, vector<2x32xf32> -> vector<2x32xf32>
    %133 = arith.addf %126, %132 : vector<2x32xf32>
    %134 = vector.extract_strided_slice %34 {offsets = [0, 14, 0], sizes = [2, 1, 64], strides = [1, 1, 1]} : vector<2x32x64xf32> to vector<2x1x64xf32>
    %135 = vector.shape_cast %134 : vector<2x1x64xf32> to vector<2x64xf32>
    %136 = arith.truncf %135 : vector<2x64xf32> to vector<2x64xbf16>
    %c14 = arith.constant 14 : index
    %c0_48 = arith.constant 0 : index
    %c0_49 = arith.constant 0 : index
    %137 = vector.load %arg6[%c14, %c0_48, %c0_49] : memref<32x32x64xbf16, #tpu.memory_space<vmem>>, vector<1x32x64xbf16>
    %138 = vector.shape_cast %137 : vector<1x32x64xbf16> to vector<32x64xbf16>
    %cst_50 = arith.constant dense<0.000000e+00> : vector<2x32xf32>
    %139 = tpu.matmul %136, %138, %cst_50 {dimension_numbers = #tpu.dot_dimension_numbers<[1], [1], [0], [0], [0, 0, 1, 0], [], []>} : vector<2x64xbf16>, vector<32x64xbf16>, vector<2x32xf32> -> vector<2x32xf32>
    %140 = arith.addf %133, %139 : vector<2x32xf32>
    %141 = vector.extract_strided_slice %34 {offsets = [0, 15, 0], sizes = [2, 1, 64], strides = [1, 1, 1]} : vector<2x32x64xf32> to vector<2x1x64xf32>
    %142 = vector.shape_cast %141 : vector<2x1x64xf32> to vector<2x64xf32>
    %143 = arith.truncf %142 : vector<2x64xf32> to vector<2x64xbf16>
    %c15 = arith.constant 15 : index
    %c0_51 = arith.constant 0 : index
    %c0_52 = arith.constant 0 : index
    %144 = vector.load %arg6[%c15, %c0_51, %c0_52] : memref<32x32x64xbf16, #tpu.memory_space<vmem>>, vector<1x32x64xbf16>
    %145 = vector.shape_cast %144 : vector<1x32x64xbf16> to vector<32x64xbf16>
    %cst_53 = arith.constant dense<0.000000e+00> : vector<2x32xf32>
    %146 = tpu.matmul %143, %145, %cst_53 {dimension_numbers = #tpu.dot_dimension_numbers<[1], [1], [0], [0], [0, 0, 1, 0], [], []>} : vector<2x64xbf16>, vector<32x64xbf16>, vector<2x32xf32> -> vector<2x32xf32>
    %147 = arith.addf %140, %146 : vector<2x32xf32>
    %148 = vector.extract_strided_slice %34 {offsets = [0, 16, 0], sizes = [2, 1, 64], strides = [1, 1, 1]} : vector<2x32x64xf32> to vector<2x1x64xf32>
    %149 = vector.shape_cast %148 : vector<2x1x64xf32> to vector<2x64xf32>
    %150 = arith.truncf %149 : vector<2x64xf32> to vector<2x64xbf16>
    %c16 = arith.constant 16 : index
    %c0_54 = arith.constant 0 : index
    %c0_55 = arith.constant 0 : index
    %151 = vector.load %arg6[%c16, %c0_54, %c0_55] : memref<32x32x64xbf16, #tpu.memory_space<vmem>>, vector<1x32x64xbf16>
    %152 = vector.shape_cast %151 : vector<1x32x64xbf16> to vector<32x64xbf16>
    %cst_56 = arith.constant dense<0.000000e+00> : vector<2x32xf32>
    %153 = tpu.matmul %150, %152, %cst_56 {dimension_numbers = #tpu.dot_dimension_numbers<[1], [1], [0], [0], [0, 0, 1, 0], [], []>} : vector<2x64xbf16>, vector<32x64xbf16>, vector<2x32xf32> -> vector<2x32xf32>
    %154 = arith.addf %147, %153 : vector<2x32xf32>
    %155 = vector.extract_strided_slice %34 {offsets = [0, 17, 0], sizes = [2, 1, 64], strides = [1, 1, 1]} : vector<2x32x64xf32> to vector<2x1x64xf32>
    %156 = vector.shape_cast %155 : vector<2x1x64xf32> to vector<2x64xf32>
    %157 = arith.truncf %156 : vector<2x64xf32> to vector<2x64xbf16>
    %c17 = arith.constant 17 : index
    %c0_57 = arith.constant 0 : index
    %c0_58 = arith.constant 0 : index
    %158 = vector.load %arg6[%c17, %c0_57, %c0_58] : memref<32x32x64xbf16, #tpu.memory_space<vmem>>, vector<1x32x64xbf16>
    %159 = vector.shape_cast %158 : vector<1x32x64xbf16> to vector<32x64xbf16>
    %cst_59 = arith.constant dense<0.000000e+00> : vector<2x32xf32>
    %160 = tpu.matmul %157, %159, %cst_59 {dimension_numbers = #tpu.dot_dimension_numbers<[1], [1], [0], [0], [0, 0, 1, 0], [], []>} : vector<2x64xbf16>, vector<32x64xbf16>, vector<2x32xf32> -> vector<2x32xf32>
    %161 = arith.addf %154, %160 : vector<2x32xf32>
    %162 = vector.extract_strided_slice %34 {offsets = [0, 18, 0], sizes = [2, 1, 64], strides = [1, 1, 1]} : vector<2x32x64xf32> to vector<2x1x64xf32>
    %163 = vector.shape_cast %162 : vector<2x1x64xf32> to vector<2x64xf32>
    %164 = arith.truncf %163 : vector<2x64xf32> to vector<2x64xbf16>
    %c18 = arith.constant 18 : index
    %c0_60 = arith.constant 0 : index
    %c0_61 = arith.constant 0 : index
    %165 = vector.load %arg6[%c18, %c0_60, %c0_61] : memref<32x32x64xbf16, #tpu.memory_space<vmem>>, vector<1x32x64xbf16>
    %166 = vector.shape_cast %165 : vector<1x32x64xbf16> to vector<32x64xbf16>
    %cst_62 = arith.constant dense<0.000000e+00> : vector<2x32xf32>
    %167 = tpu.matmul %164, %166, %cst_62 {dimension_numbers = #tpu.dot_dimension_numbers<[1], [1], [0], [0], [0, 0, 1, 0], [], []>} : vector<2x64xbf16>, vector<32x64xbf16>, vector<2x32xf32> -> vector<2x32xf32>
    %168 = arith.addf %161, %167 : vector<2x32xf32>
    %169 = vector.extract_strided_slice %34 {offsets = [0, 19, 0], sizes = [2, 1, 64], strides = [1, 1, 1]} : vector<2x32x64xf32> to vector<2x1x64xf32>
    %170 = vector.shape_cast %169 : vector<2x1x64xf32> to vector<2x64xf32>
    %171 = arith.truncf %170 : vector<2x64xf32> to vector<2x64xbf16>
    %c19 = arith.constant 19 : index
    %c0_63 = arith.constant 0 : index
    %c0_64 = arith.constant 0 : index
    %172 = vector.load %arg6[%c19, %c0_63, %c0_64] : memref<32x32x64xbf16, #tpu.memory_space<vmem>>, vector<1x32x64xbf16>
    %173 = vector.shape_cast %172 : vector<1x32x64xbf16> to vector<32x64xbf16>
    %cst_65 = arith.constant dense<0.000000e+00> : vector<2x32xf32>
    %174 = tpu.matmul %171, %173, %cst_65 {dimension_numbers = #tpu.dot_dimension_numbers<[1], [1], [0], [0], [0, 0, 1, 0], [], []>} : vector<2x64xbf16>, vector<32x64xbf16>, vector<2x32xf32> -> vector<2x32xf32>
    %175 = arith.addf %168, %174 : vector<2x32xf32>
    %176 = vector.extract_strided_slice %34 {offsets = [0, 20, 0], sizes = [2, 1, 64], strides = [1, 1, 1]} : vector<2x32x64xf32> to vector<2x1x64xf32>
    %177 = vector.shape_cast %176 : vector<2x1x64xf32> to vector<2x64xf32>
    %178 = arith.truncf %177 : vector<2x64xf32> to vector<2x64xbf16>
    %c20 = arith.constant 20 : index
    %c0_66 = arith.constant 0 : index
    %c0_67 = arith.constant 0 : index
    %179 = vector.load %arg6[%c20, %c0_66, %c0_67] : memref<32x32x64xbf16, #tpu.memory_space<vmem>>, vector<1x32x64xbf16>
    %180 = vector.shape_cast %179 : vector<1x32x64xbf16> to vector<32x64xbf16>
    %cst_68 = arith.constant dense<0.000000e+00> : vector<2x32xf32>
    %181 = tpu.matmul %178, %180, %cst_68 {dimension_numbers = #tpu.dot_dimension_numbers<[1], [1], [0], [0], [0, 0, 1, 0], [], []>} : vector<2x64xbf16>, vector<32x64xbf16>, vector<2x32xf32> -> vector<2x32xf32>
    %182 = arith.addf %175, %181 : vector<2x32xf32>
    %183 = vector.extract_strided_slice %34 {offsets = [0, 21, 0], sizes = [2, 1, 64], strides = [1, 1, 1]} : vector<2x32x64xf32> to vector<2x1x64xf32>
    %184 = vector.shape_cast %183 : vector<2x1x64xf32> to vector<2x64xf32>
    %185 = arith.truncf %184 : vector<2x64xf32> to vector<2x64xbf16>
    %c21 = arith.constant 21 : index
    %c0_69 = arith.constant 0 : index
    %c0_70 = arith.constant 0 : index
    %186 = vector.load %arg6[%c21, %c0_69, %c0_70] : memref<32x32x64xbf16, #tpu.memory_space<vmem>>, vector<1x32x64xbf16>
    %187 = vector.shape_cast %186 : vector<1x32x64xbf16> to vector<32x64xbf16>
    %cst_71 = arith.constant dense<0.000000e+00> : vector<2x32xf32>
    %188 = tpu.matmul %185, %187, %cst_71 {dimension_numbers = #tpu.dot_dimension_numbers<[1], [1], [0], [0], [0, 0, 1, 0], [], []>} : vector<2x64xbf16>, vector<32x64xbf16>, vector<2x32xf32> -> vector<2x32xf32>
    %189 = arith.addf %182, %188 : vector<2x32xf32>
    %190 = vector.extract_strided_slice %34 {offsets = [0, 22, 0], sizes = [2, 1, 64], strides = [1, 1, 1]} : vector<2x32x64xf32> to vector<2x1x64xf32>
    %191 = vector.shape_cast %190 : vector<2x1x64xf32> to vector<2x64xf32>
    %192 = arith.truncf %191 : vector<2x64xf32> to vector<2x64xbf16>
    %c22 = arith.constant 22 : index
    %c0_72 = arith.constant 0 : index
    %c0_73 = arith.constant 0 : index
    %193 = vector.load %arg6[%c22, %c0_72, %c0_73] : memref<32x32x64xbf16, #tpu.memory_space<vmem>>, vector<1x32x64xbf16>
    %194 = vector.shape_cast %193 : vector<1x32x64xbf16> to vector<32x64xbf16>
    %cst_74 = arith.constant dense<0.000000e+00> : vector<2x32xf32>
    %195 = tpu.matmul %192, %194, %cst_74 {dimension_numbers = #tpu.dot_dimension_numbers<[1], [1], [0], [0], [0, 0, 1, 0], [], []>} : vector<2x64xbf16>, vector<32x64xbf16>, vector<2x32xf32> -> vector<2x32xf32>
    %196 = arith.addf %189, %195 : vector<2x32xf32>
    %197 = vector.extract_strided_slice %34 {offsets = [0, 23, 0], sizes = [2, 1, 64], strides = [1, 1, 1]} : vector<2x32x64xf32> to vector<2x1x64xf32>
    %198 = vector.shape_cast %197 : vector<2x1x64xf32> to vector<2x64xf32>
    %199 = arith.truncf %198 : vector<2x64xf32> to vector<2x64xbf16>
    %c23 = arith.constant 23 : index
    %c0_75 = arith.constant 0 : index
    %c0_76 = arith.constant 0 : index
    %200 = vector.load %arg6[%c23, %c0_75, %c0_76] : memref<32x32x64xbf16, #tpu.memory_space<vmem>>, vector<1x32x64xbf16>
    %201 = vector.shape_cast %200 : vector<1x32x64xbf16> to vector<32x64xbf16>
    %cst_77 = arith.constant dense<0.000000e+00> : vector<2x32xf32>
    %202 = tpu.matmul %199, %201, %cst_77 {dimension_numbers = #tpu.dot_dimension_numbers<[1], [1], [0], [0], [0, 0, 1, 0], [], []>} : vector<2x64xbf16>, vector<32x64xbf16>, vector<2x32xf32> -> vector<2x32xf32>
    %203 = arith.addf %196, %202 : vector<2x32xf32>
    %204 = vector.extract_strided_slice %34 {offsets = [0, 24, 0], sizes = [2, 1, 64], strides = [1, 1, 1]} : vector<2x32x64xf32> to vector<2x1x64xf32>
    %205 = vector.shape_cast %204 : vector<2x1x64xf32> to vector<2x64xf32>
    %206 = arith.truncf %205 : vector<2x64xf32> to vector<2x64xbf16>
    %c24 = arith.constant 24 : index
    %c0_78 = arith.constant 0 : index
    %c0_79 = arith.constant 0 : index
    %207 = vector.load %arg6[%c24, %c0_78, %c0_79] : memref<32x32x64xbf16, #tpu.memory_space<vmem>>, vector<1x32x64xbf16>
    %208 = vector.shape_cast %207 : vector<1x32x64xbf16> to vector<32x64xbf16>
    %cst_80 = arith.constant dense<0.000000e+00> : vector<2x32xf32>
    %209 = tpu.matmul %206, %208, %cst_80 {dimension_numbers = #tpu.dot_dimension_numbers<[1], [1], [0], [0], [0, 0, 1, 0], [], []>} : vector<2x64xbf16>, vector<32x64xbf16>, vector<2x32xf32> -> vector<2x32xf32>
    %210 = arith.addf %203, %209 : vector<2x32xf32>
    %211 = vector.extract_strided_slice %34 {offsets = [0, 25, 0], sizes = [2, 1, 64], strides = [1, 1, 1]} : vector<2x32x64xf32> to vector<2x1x64xf32>
    %212 = vector.shape_cast %211 : vector<2x1x64xf32> to vector<2x64xf32>
    %213 = arith.truncf %212 : vector<2x64xf32> to vector<2x64xbf16>
    %c25 = arith.constant 25 : index
    %c0_81 = arith.constant 0 : index
    %c0_82 = arith.constant 0 : index
    %214 = vector.load %arg6[%c25, %c0_81, %c0_82] : memref<32x32x64xbf16, #tpu.memory_space<vmem>>, vector<1x32x64xbf16>
    %215 = vector.shape_cast %214 : vector<1x32x64xbf16> to vector<32x64xbf16>
    %cst_83 = arith.constant dense<0.000000e+00> : vector<2x32xf32>
    %216 = tpu.matmul %213, %215, %cst_83 {dimension_numbers = #tpu.dot_dimension_numbers<[1], [1], [0], [0], [0, 0, 1, 0], [], []>} : vector<2x64xbf16>, vector<32x64xbf16>, vector<2x32xf32> -> vector<2x32xf32>
    %217 = arith.addf %210, %216 : vector<2x32xf32>
    %218 = vector.extract_strided_slice %34 {offsets = [0, 26, 0], sizes = [2, 1, 64], strides = [1, 1, 1]} : vector<2x32x64xf32> to vector<2x1x64xf32>
    %219 = vector.shape_cast %218 : vector<2x1x64xf32> to vector<2x64xf32>
    %220 = arith.truncf %219 : vector<2x64xf32> to vector<2x64xbf16>
    %c26 = arith.constant 26 : index
    %c0_84 = arith.constant 0 : index
    %c0_85 = arith.constant 0 : index
    %221 = vector.load %arg6[%c26, %c0_84, %c0_85] : memref<32x32x64xbf16, #tpu.memory_space<vmem>>, vector<1x32x64xbf16>
    %222 = vector.shape_cast %221 : vector<1x32x64xbf16> to vector<32x64xbf16>
    %cst_86 = arith.constant dense<0.000000e+00> : vector<2x32xf32>
    %223 = tpu.matmul %220, %222, %cst_86 {dimension_numbers = #tpu.dot_dimension_numbers<[1], [1], [0], [0], [0, 0, 1, 0], [], []>} : vector<2x64xbf16>, vector<32x64xbf16>, vector<2x32xf32> -> vector<2x32xf32>
    %224 = arith.addf %217, %223 : vector<2x32xf32>
    %225 = vector.extract_strided_slice %34 {offsets = [0, 27, 0], sizes = [2, 1, 64], strides = [1, 1, 1]} : vector<2x32x64xf32> to vector<2x1x64xf32>
    %226 = vector.shape_cast %225 : vector<2x1x64xf32> to vector<2x64xf32>
    %227 = arith.truncf %226 : vector<2x64xf32> to vector<2x64xbf16>
    %c27 = arith.constant 27 : index
    %c0_87 = arith.constant 0 : index
    %c0_88 = arith.constant 0 : index
    %228 = vector.load %arg6[%c27, %c0_87, %c0_88] : memref<32x32x64xbf16, #tpu.memory_space<vmem>>, vector<1x32x64xbf16>
    %229 = vector.shape_cast %228 : vector<1x32x64xbf16> to vector<32x64xbf16>
    %cst_89 = arith.constant dense<0.000000e+00> : vector<2x32xf32>
    %230 = tpu.matmul %227, %229, %cst_89 {dimension_numbers = #tpu.dot_dimension_numbers<[1], [1], [0], [0], [0, 0, 1, 0], [], []>} : vector<2x64xbf16>, vector<32x64xbf16>, vector<2x32xf32> -> vector<2x32xf32>
    %231 = arith.addf %224, %230 : vector<2x32xf32>
    %232 = vector.extract_strided_slice %34 {offsets = [0, 28, 0], sizes = [2, 1, 64], strides = [1, 1, 1]} : vector<2x32x64xf32> to vector<2x1x64xf32>
    %233 = vector.shape_cast %232 : vector<2x1x64xf32> to vector<2x64xf32>
    %234 = arith.truncf %233 : vector<2x64xf32> to vector<2x64xbf16>
    %c28 = arith.constant 28 : index
    %c0_90 = arith.constant 0 : index
    %c0_91 = arith.constant 0 : index
    %235 = vector.load %arg6[%c28, %c0_90, %c0_91] : memref<32x32x64xbf16, #tpu.memory_space<vmem>>, vector<1x32x64xbf16>
    %236 = vector.shape_cast %235 : vector<1x32x64xbf16> to vector<32x64xbf16>
    %cst_92 = arith.constant dense<0.000000e+00> : vector<2x32xf32>
    %237 = tpu.matmul %234, %236, %cst_92 {dimension_numbers = #tpu.dot_dimension_numbers<[1], [1], [0], [0], [0, 0, 1, 0], [], []>} : vector<2x64xbf16>, vector<32x64xbf16>, vector<2x32xf32> -> vector<2x32xf32>
    %238 = arith.addf %231, %237 : vector<2x32xf32>
    %239 = vector.extract_strided_slice %34 {offsets = [0, 29, 0], sizes = [2, 1, 64], strides = [1, 1, 1]} : vector<2x32x64xf32> to vector<2x1x64xf32>
    %240 = vector.shape_cast %239 : vector<2x1x64xf32> to vector<2x64xf32>
    %241 = arith.truncf %240 : vector<2x64xf32> to vector<2x64xbf16>
    %c29 = arith.constant 29 : index
    %c0_93 = arith.constant 0 : index
    %c0_94 = arith.constant 0 : index
    %242 = vector.load %arg6[%c29, %c0_93, %c0_94] : memref<32x32x64xbf16, #tpu.memory_space<vmem>>, vector<1x32x64xbf16>
    %243 = vector.shape_cast %242 : vector<1x32x64xbf16> to vector<32x64xbf16>
    %cst_95 = arith.constant dense<0.000000e+00> : vector<2x32xf32>
    %244 = tpu.matmul %241, %243, %cst_95 {dimension_numbers = #tpu.dot_dimension_numbers<[1], [1], [0], [0], [0, 0, 1, 0], [], []>} : vector<2x64xbf16>, vector<32x64xbf16>, vector<2x32xf32> -> vector<2x32xf32>
    %245 = arith.addf %238, %244 : vector<2x32xf32>
    %246 = vector.extract_strided_slice %34 {offsets = [0, 30, 0], sizes = [2, 1, 64], strides = [1, 1, 1]} : vector<2x32x64xf32> to vector<2x1x64xf32>
    %247 = vector.shape_cast %246 : vector<2x1x64xf32> to vector<2x64xf32>
    %248 = arith.truncf %247 : vector<2x64xf32> to vector<2x64xbf16>
    %c30 = arith.constant 30 : index
    %c0_96 = arith.constant 0 : index
    %c0_97 = arith.constant 0 : index
    %249 = vector.load %arg6[%c30, %c0_96, %c0_97] : memref<32x32x64xbf16, #tpu.memory_space<vmem>>, vector<1x32x64xbf16>
    %250 = vector.shape_cast %249 : vector<1x32x64xbf16> to vector<32x64xbf16>
    %cst_98 = arith.constant dense<0.000000e+00> : vector<2x32xf32>
    %251 = tpu.matmul %248, %250, %cst_98 {dimension_numbers = #tpu.dot_dimension_numbers<[1], [1], [0], [0], [0, 0, 1, 0], [], []>} : vector<2x64xbf16>, vector<32x64xbf16>, vector<2x32xf32> -> vector<2x32xf32>
    %252 = arith.addf %245, %251 : vector<2x32xf32>
    %253 = vector.extract_strided_slice %34 {offsets = [0, 31, 0], sizes = [2, 1, 64], strides = [1, 1, 1]} : vector<2x32x64xf32> to vector<2x1x64xf32>
    %254 = vector.shape_cast %253 : vector<2x1x64xf32> to vector<2x64xf32>
    %255 = arith.truncf %254 : vector<2x64xf32> to vector<2x64xbf16>
    %c31 = arith.constant 31 : index
    %c0_99 = arith.constant 0 : index
    %c0_100 = arith.constant 0 : index
    %256 = vector.load %arg6[%c31, %c0_99, %c0_100] : memref<32x32x64xbf16, #tpu.memory_space<vmem>>, vector<1x32x64xbf16>
    %257 = vector.shape_cast %256 : vector<1x32x64xbf16> to vector<32x64xbf16>
    %cst_101 = arith.constant dense<0.000000e+00> : vector<2x32xf32>
    %258 = tpu.matmul %255, %257, %cst_101 {dimension_numbers = #tpu.dot_dimension_numbers<[1], [1], [0], [0], [0, 0, 1, 0], [], []>} : vector<2x64xbf16>, vector<32x64xbf16>, vector<2x32xf32> -> vector<2x32xf32>
    %259 = arith.addf %252, %258 : vector<2x32xf32>
    %c0_102 = arith.constant 0 : index
    %c0_103 = arith.constant 0 : index
    %260 = vector.load %arg3[%c0_102, %c0_103] : memref<1x128xf32, #tpu.memory_space<vmem>>, vector<1x32xf32>
    %c0_104 = arith.constant 0 : index
    %c32 = arith.constant 32 : index
    %261 = vector.load %arg3[%c0_104, %c32] : memref<1x128xf32, #tpu.memory_space<vmem>>, vector<1x32xf32>
    %c0_105 = arith.constant 0 : index
    %c64 = arith.constant 64 : index
    %262 = vector.load %arg3[%c0_105, %c64] : memref<1x128xf32, #tpu.memory_space<vmem>>, vector<1x1xf32>
    %263 = vector.broadcast %260 : vector<1x32xf32> to vector<2x32xf32>
    %264 = arith.addf %259, %263 : vector<2x32xf32>
    %cst_106 = arith.constant 0.000000e+00 : f32
    %265 = vector.broadcast %cst_106 : f32 to vector<2x32xf32>
    %266 = arith.maximumf %264, %265 : vector<2x32xf32>
    %267 = vector.broadcast %261 : vector<1x32xf32> to vector<2x32xf32>
    %268 = arith.mulf %266, %267 : vector<2x32xf32>
    %cst_107 = arith.constant dense<0.000000e+00> : vector<2xf32>
    %269 = vector.multi_reduction <add>, %268, %cst_107 [1] : vector<2x32xf32> to vector<2xf32>
    %270 = vector.shape_cast %269 : vector<2xf32> to vector<2x1xf32>
    %271 = vector.broadcast %262 : vector<1x1xf32> to vector<2x1xf32>
    %272 = arith.addf %270, %271 : vector<2x1xf32>
    %273 = math.tanh %272 : vector<2x1xf32>
    %c0_108 = arith.constant 0 : index
    %c0_109 = arith.constant 0 : index
    %274 = vector.load %arg5[%c0_108, %c0_109] : memref<2x1xf32, #tpu.memory_space<vmem>>, vector<2x1xf32>
    tpu.vector_store %arg5[%c0_108, %c0_109], %273 {strides = array<i32>} : memref<2x1xf32, #tpu.memory_space<vmem>>, vector<2x1xf32>,
    return
  }
  func.func @transform_0(%arg0: i32) -> (i32, i32, i32) {
    %c0_i32 = arith.constant 0 : i32
    %c0_i32_0 = arith.constant 0 : i32
    %c0_i32_1 = arith.constant 0 : i32
    %c0_i32_2 = arith.constant 0 : i32
    return %c0_i32, %c0_i32_0, %c0_i32_1 : i32, i32, i32
  }
  func.func @transform_1(%arg0: i32) -> (i32, i32) {
    %c0_i32 = arith.constant 0 : i32
    %c0_i32_0 = arith.constant 0 : i32
    %c0_i32_1 = arith.constant 0 : i32
    return %c0_i32, %c0_i32_0 : i32, i32
  }
  func.func @transform_2(%arg0: i32) -> (i32, i32) {
    %c0_i32 = arith.constant 0 : i32
    %c0_i32_0 = arith.constant 0 : i32
    %c0_i32_1 = arith.constant 0 : i32
    return %c0_i32, %c0_i32_0 : i32, i32
  }
  func.func @transform_4(%arg0: i32) -> (i32, i32) {
    %c0_i32 = arith.constant 0 : i32
    %c0_i32_0 = arith.constant 0 : i32
    %c0_i32_1 = arith.constant 0 : i32
    return %c0_i32, %c0_i32_0 : i32, i32
  }
}

</mosaic_0001>

<llo_original>
// kernel: value_head_forward.1
$region0: #{value_head_forward.1}
  #allocation0 [shape = 'u32[]', space=smem, size = 0x4, offset = 0x4, fixed_abs, tag = 'smem constant byte address 0x4 - core index']
  #allocation1 [shape = 'u32[144,128]{1,0:T(1,128)}', space=vmem, size = 0x12000, scoped, tag = 'internal scratch']
  #allocation2 [shape = 'bf16[32,32,64]{2,1,0:T(8,128)(2,1)}', space=vmem, size = 0x40000, scoped, tag = 'scratch operand']
  #allocation3 [shape = 's32[1]{0}', space=sflag, size = 0x4, scoped, tag = 'scratch operand']
  #allocation4 [shape = 's32[]', space=sflag, size = 0x4, offset = 0, fixed_abs, tag = 'sflag constant byte address 0x0 - dummy sync flag']
  #allocation5 [shape = 's32[]', space=sflag, size = 0x4, offset = 0, fixed_abs, tag = 'sflag constant byte address 0x0 - dummy sync flag']
  #allocation6 [shape = 'u32[]', space=smem, size = 0x4, offset = 0x44, fixed_abs, tag = 'smem constant byte address 0x44 - assertion arg 0']
  #allocation7 [shape = 'u32[]', space=smem, size = 0x4, offset = 0x48, fixed_abs, tag = 'smem constant byte address 0x48 - assertion arg 1']
  %s0 = inlined_call_operand.vmem [shape: f32[2,4,64], index: 0, kind: input, shape index: {}]
  %s1 = inlined_call_operand.vmem [shape: f32[32,5], index: 1, kind: input, shape index: {}]
  %s2 = inlined_call_operand.vmem [shape: f32[1,128], index: 2, kind: input, shape index: {}]
  %s3 = inlined_call_operand.hbm [shape: bf16[32,32,64], index: 3, kind: input, shape index: {}]
  %s4 = inlined_call_operand.vmem [shape: f32[2,1], index: 4, kind: output, shape index: {}]
  %s5 = sld [smem:[#allocation0]]
  $region26: #{value_head_forward.1} parent=0
    _
  %s7 = ssub.s32 1, %s5
  %s8 = scalar_select 0, %s7, %s5
  // Predicated region
  $region2: #{value_head_forward.1} parent=0 // pred_check
    _
  $region3: #{value_head_forward.1} parent=0 // pred_check_branch
    %10 = sbr.rel (0) target = $region5
  $region4: #{value_head_forward.1} parent=0 // pred_region
    _
  $region5: #{value_head_forward.1} parent=0 // pred_fallthru
    _
  // Predicated region
  $region6: #{value_head_forward.1} parent=0 // pred_check
    _
  $region7: #{value_head_forward.1} parent=0 // pred_check_branch
    %12 = sbr.rel (0) target = $region9
  $region8: #{value_head_forward.1} parent=0 // pred_region
    _
  $region9: #{value_head_forward.1} parent=0 // pred_fallthru
    _
  // Predicated region
  $region10: #{value_head_forward.1} parent=0 // pred_check
    _
  $region11: #{value_head_forward.1} parent=0 // pred_check_branch
    %14 = sbr.rel (0) target = $region13
  $region12: #{value_head_forward.1} parent=0 // pred_region
    _
  $region13: #{value_head_forward.1} parent=0 // pred_fallthru
    _
  // Predicated region
  $region14: #{value_head_forward.1} parent=0 // pred_check
    _
  $region15: #{value_head_forward.1} parent=0 // pred_check_branch
    %17 = sbr.rel target = $region17
  $region16: #{value_head_forward.1} parent=0 // pred_region
    %18 = sst [smem:[#allocation6]] [#allocation5]
    %19 = sst [smem:[#allocation7]] [#allocation4]
  $region17: #{value_head_forward.1} parent=0 // pred_fallthru
    _
  %21 = shalt.err (0)
  %s23 = sshll.u32 [#allocation2], 4
  %s24 = int_to_ptr.vmem [resolvable:$true] %s23
  %26 = dma.hbm_to_vmem [thread:$0]  %s3, 8192, %s24, [#allocation3]
  %v27 = vld [vmem:[%s0] sm:$0xf]
  %v28 = vld [vmem:[%s0 + $0x4] sm:$0xf]
  %v29 = vld [vmem:[%s1] sm:$0xff]
  %v30 = vld [vmem:[%s1 + $0x8] sm:$0xff]
  %v31 = vld [vmem:[%s1 + $0x10] sm:$0xff]
  %v32 = vld [vmem:[%s1 + $0x18] sm:$0xff]
  %34 = vset.pattern.permute.xlu0 0
  %35 = vperm.xlu0 %34, %v29
  %v36 = vpop.permute.xlu0 %35
  %39 = vset.pattern.permute.xlu0 0
  %40 = vperm.xlu0 %39, %v30
  %v41 = vpop.permute.xlu0 %40
  %44 = vset.pattern.permute.xlu0 0
  %45 = vperm.xlu0 %44, %v31
  %v46 = vpop.permute.xlu0 %45
  %49 = vset.pattern.permute.xlu0 0
  %50 = vperm.xlu0 %49, %v32
  %v51 = vpop.permute.xlu0 %50
  %v53 = vlaneseq
  %v54 = vshrl.u32 %v53, 7
  %v55 = vsub.s32 0, %v54
  %v56 = vrot.slane %v27, %v55
  %v57 = vlaneseq
  %v58 = vshrl.u32 %v57, 7
  %v59 = vsub.s32 0, %v58
  %v60 = vrot.slane %v28, %v59
  %v61 = vmul.f32 %v36, %v56
  %v62 = vmul.f32 %v41, %v56
  %v63 = vmul.f32 %v46, %v56
  %v64 = vmul.f32 %v51, %v56
  %v65 = vmul.f32 %v36, %v60
  %v66 = vmul.f32 %v41, %v60
  %v67 = vmul.f32 %v46, %v60
  %v68 = vmul.f32 %v51, %v60
  %69 = vset.pattern.permute.xlu0 1
  %70 = vperm.xlu0 %69, %v29
  %v71 = vpop.permute.xlu0 %70
  %73 = vset.pattern.permute.xlu0 1
  %74 = vperm.xlu0 %73, %v30
  %v75 = vpop.permute.xlu0 %74
  %77 = vset.pattern.permute.xlu0 1
  %78 = vperm.xlu0 %77, %v31
  %v79 = vpop.permute.xlu0 %78
  %81 = vset.pattern.permute.xlu0 1
  %82 = vperm.xlu0 %81, %v32
  %v83 = vpop.permute.xlu0 %82
  %v85 = vlaneseq
  %v86 = vshrl.u32 %v85, 7
  %v87 = vsub.s32 1, %v86
  %v88 = vrot.slane %v27, %v87
  %v89 = vlaneseq
  %v90 = vshrl.u32 %v89, 7
  %v91 = vsub.s32 1, %v90
  %v92 = vrot.slane %v28, %v91
  %v93 = vmul.f32 %v71, %v88
  %v94 = vmul.f32 %v75, %v88
  %v95 = vmul.f32 %v79, %v88
  %v96 = vmul.f32 %v83, %v88
  %v97 = vmul.f32 %v71, %v92
  %v98 = vmul.f32 %v75, %v92
  %v99 = vmul.f32 %v79, %v92
  %v100 = vmul.f32 %v83, %v92
  %v101 = vadd.f32 %v61, %v93
  %v102 = vadd.f32 %v62, %v94
  %v103 = vadd.f32 %v63, %v95
  %v104 = vadd.f32 %v64, %v96
  %v105 = vadd.f32 %v65, %v97
  %v106 = vadd.f32 %v66, %v98
  %v107 = vadd.f32 %v67, %v99
  %v108 = vadd.f32 %v68, %v100
  %109 = vset.pattern.permute.xlu0 2
  %110 = vperm.xlu0 %109, %v29
  %v111 = vpop.permute.xlu0 %110
  %113 = vset.pattern.permute.xlu0 2
  %114 = vperm.xlu0 %113, %v30
  %v115 = vpop.permute.xlu0 %114
  %117 = vset.pattern.permute.xlu0 2
  %118 = vperm.xlu0 %117, %v31
  %v119 = vpop.permute.xlu0 %118
  %121 = vset.pattern.permute.xlu0 2
  %122 = vperm.xlu0 %121, %v32
  %v123 = vpop.permute.xlu0 %122
  %v125 = vlaneseq
  %v126 = vshrl.u32 %v125, 7
  %v127 = vsub.s32 2, %v126
  %v128 = vrot.slane %v27, %v127
  %v129 = vlaneseq
  %v130 = vshrl.u32 %v129, 7
  %v131 = vsub.s32 2, %v130
  %v132 = vrot.slane %v28, %v131
  %v133 = vmul.f32 %v111, %v128
  %v134 = vmul.f32 %v115, %v128
  %v135 = vmul.f32 %v119, %v128
  %v136 = vmul.f32 %v123, %v128
  %v137 = vmul.f32 %v111, %v132
  %v138 = vmul.f32 %v115, %v132
  %v139 = vmul.f32 %v119, %v132
  %v140 = vmul.f32 %v123, %v132
  %v141 = vadd.f32 %v101, %v133
  %v142 = vadd.f32 %v102, %v134
  %v143 = vadd.f32 %v103, %v135
  %v144 = vadd.f32 %v104, %v136
  %v145 = vadd.f32 %v105, %v137
  %v146 = vadd.f32 %v106, %v138
  %v147 = vadd.f32 %v107, %v139
  %v148 = vadd.f32 %v108, %v140
  %149 = vset.pattern.permute.xlu0 3
  %150 = vperm.xlu0 %149, %v29
  %v151 = vpop.permute.xlu0 %150
  %153 = vset.pattern.permute.xlu0 3
  %154 = vperm.xlu0 %153, %v30
  %v155 = vpop.permute.xlu0 %154
  %157 = vset.pattern.permute.xlu0 3
  %158 = vperm.xlu0 %157, %v31
  %v159 = vpop.permute.xlu0 %158
  %161 = vset.pattern.permute.xlu0 3
  %162 = vperm.xlu0 %161, %v32
  %v163 = vpop.permute.xlu0 %162
  %v165 = vlaneseq
  %v166 = vshrl.u32 %v165, 7
  %v167 = vsub.s32 3, %v166
  %v168 = vrot.slane %v27, %v167
  %v169 = vlaneseq
  %v170 = vshrl.u32 %v169, 7
  %v171 = vsub.s32 3, %v170
  %v172 = vrot.slane %v28, %v171
  %v173 = vmul.f32 %v151, %v168
  %v174 = vmul.f32 %v155, %v168
  %v175 = vmul.f32 %v159, %v168
  %v176 = vmul.f32 %v163, %v168
  %v177 = vmul.f32 %v151, %v172
  %v178 = vmul.f32 %v155, %v172
  %v179 = vmul.f32 %v159, %v172
  %v180 = vmul.f32 %v163, %v172
  %v181 = vadd.f32 %v141, %v173
  %v182 = vadd.f32 %v142, %v174
  %v183 = vadd.f32 %v143, %v175
  %v184 = vadd.f32 %v144, %v176
  %v185 = vadd.f32 %v145, %v177
  %v186 = vadd.f32 %v146, %v178
  %v187 = vadd.f32 %v147, %v179
  %v188 = vadd.f32 %v148, %v180
  %189 = vset.pattern.permute.xlu0 4
  %190 = vperm.xlu0 %189, %v29
  %v191 = vpop.permute.xlu0 %190
  %193 = vset.pattern.permute.xlu0 4
  %194 = vperm.xlu0 %193, %v30
  %v195 = vpop.permute.xlu0 %194
  %197 = vset.pattern.permute.xlu0 4
  %198 = vperm.xlu0 %197, %v31
  %v199 = vpop.permute.xlu0 %198
  %201 = vset.pattern.permute.xlu0 4
  %202 = vperm.xlu0 %201, %v32
  %v203 = vpop.permute.xlu0 %202
  %v205 = vadd.f32 %v181, %v191
  %v206 = vadd.f32 %v182, %v195
  %v207 = vadd.f32 %v183, %v199
  %v208 = vadd.f32 %v184, %v203
  %v209 = vadd.f32 %v185, %v191
  %v210 = vadd.f32 %v186, %v195
  %v211 = vadd.f32 %v187, %v199
  %v212 = vadd.f32 %v188, %v203
  %v213 = vmax.f32 %v205, 0.0
  %v214 = vmax.f32 %v206, 0.0
  %v215 = vmax.f32 %v207, 0.0
  %v216 = vmax.f32 %v208, 0.0
  %v217 = vmax.f32 %v209, 0.0
  %v218 = vmax.f32 %v210, 0.0
  %v219 = vmax.f32 %v211, 0.0
  %v220 = vmax.f32 %v212, 0.0
  %s221 = smul.u32 4, 32
  %s222 = smul.u32 %s221, 4
  %s223 = smul.u32 %s222, 1
  %s224 = sshll.u32 %s223, 4
  %225 = dma.done [#allocation3], %s224
  %v226 = vpack.c.bf16 %v213, %v213
  %v227 = vpack.c.bf16 %v217, %v217
  %v228 = vld [vmem:[#allocation2] sm:$0xf]
  %v229 = vld [vmem:[#allocation2 + $0x4] sm:$0xf]
  %v230 = vld [vmem:[#allocation2 + $0x8] sm:$0xf]
  %v231 = vld [vmem:[#allocation2 + $0xc] sm:$0xf]
  %s232 = scalar_lea.vmem [#allocation2], 16
  %v233 = vld [vmem:[%s232] sm:$0xf]
  %v234 = vld [vmem:[%s232 + $0x4] sm:$0xf]
  %v235 = vld [vmem:[%s232 + $0x8] sm:$0xf]
  %v236 = vld [vmem:[%s232 + $0xc] sm:$0xf]
  %v239 = vunpack.c.l.b16 %v226
  %v240 = vunpack.c.l.b16 %v227
  %v241 = vrot.slane %v239, 1
  %vm242 = vcmask 1041409
  %v243 = vsel %vm242, %v240, %v241
  %v244 = vpack.c.b16 %v243, %v243
  %v249 = vunpack.c.l.b16 %v233
  %v250 = vunpack.c.l.b16 %v234
  %v251 = vunpack.c.l.b16 %v235
  %v252 = vunpack.c.l.b16 %v236
  %v253 = vpack.c.b16 %v250, %v249
  %v254 = vpack.c.b16 %v252, %v251
  %vm255 = vcmask 523264
  %v257 = vsel %vm255, %v244, 0
  %v260 = vsel %vm255, %v253, 0
  %v263 = vsel %vm255, %v254, 0
  %265 = vmatprep.subr.bf16.mxu0 0
  %266 = vmatpush1.bf16.xpose.msra.mxu0 0
  %267 = vmatprep.subr.bf16.mxu0 0
  %268 = vmatpush1.bf16.xpose.msra.mxu0 0
  %269 = vmatprep.subr.bf16.mxu0 0
  %270 = vmatpush1.bf16.xpose.msra.mxu0 0
  %271 = vmatprep.subr.bf16.mxu0 0
  %272 = vmatpush1.bf16.xpose.msra.mxu0 0
  %273 = vmatprep.subr.bf16.mxu0 0
  %274 = vmatpush1.bf16.xpose.msra.mxu0 0
  %275 = vmatprep.subr.bf16.mxu0 0
  %276 = vmatpush1.bf16.xpose.msra.mxu0 0
  %277 = vmatprep.subr.bf16.mxu0 0
  %278 = vmatpush1.bf16.xpose.msra.mxu0 %v263
  %279 = vmatprep.subr.bf16.mxu0 0
  %280 = vmatpush1.bf16.xpose.msra.mxu0 %v260
  %281 = vmatprep.subr.bf16.mxu0 0
  %282 = vmatpush2.bf16.xpose.msra.mxu0 0
  %283 = vmatprep.subr.bf16.mxu0 0
  %284 = vmatpush2.bf16.xpose.msra.mxu0 0
  %285 = vmatprep.subr.bf16.mxu0 0
  %286 = vmatpush2.bf16.xpose.msra.mxu0 0
  %287 = vmatprep.subr.bf16.mxu0 0
  %288 = vmatpush2.bf16.xpose.msra.mxu0 0
  %289 = vmatprep.subr.bf16.mxu0 0
  %290 = vmatpush2.bf16.xpose.msra.mxu0 0
  %291 = vmatprep.subr.bf16.mxu0 0
  %292 = vmatpush2.bf16.xpose.msra.mxu0 0
  %293 = vmatprep.subr.bf16.mxu0 0
  %294 = vmatpush2.bf16.xpose.msra.mxu0 0
  %295 = vmatprep.subr.bf16.mxu0 0
  %296 = vmatpush2.bf16.xpose.msra.mxu0 0
  %297 = vmatprep.mubr.bf16.mxu0 0
  %298 = vmatmul.mubr.bf16.gmra.mxu0 %v257
  %v299 = vpop.f32.mrf.mxu0
  %v300 = vadd.f32 0.0, %v299
  %v301 = vpop.f32.mrf.mxu0
  %v302 = vpop.f32.mrf.mxu0
  %v303 = vpop.f32.mrf.mxu0
  %304 = vdwg.mxu0
  %v305 = vrot.slane %v240, 7
  %v306 = vsel %vm242, %v305, %v239
  %v307 = vpack.c.b16 %v306, %v306
  %v312 = vunpack.c.l.b16 %v228
  %v313 = vunpack.c.l.b16 %v229
  %v314 = vunpack.c.l.b16 %v230
  %v315 = vunpack.c.l.b16 %v231
  %v316 = vpack.c.b16 %v313, %v312
  %v317 = vpack.c.b16 %v315, %v314
  %v319 = vsel %vm255, %v307, 0
  %v322 = vsel %vm255, %v316, 0
  %v325 = vsel %vm255, %v317, 0
  %327 = vmatprep.subr.bf16.mxu0 0
  %328 = vmatpush1.bf16.xpose.msra.mxu0 0
  %329 = vmatprep.subr.bf16.mxu0 0
  %330 = vmatpush1.bf16.xpose.msra.mxu0 0
  %331 = vmatprep.subr.bf16.mxu0 0
  %332 = vmatpush1.bf16.xpose.msra.mxu0 0
  %333 = vmatprep.subr.bf16.mxu0 0
  %334 = vmatpush1.bf16.xpose.msra.mxu0 0
  %335 = vmatprep.subr.bf16.mxu0 0
  %336 = vmatpush1.bf16.xpose.msra.mxu0 0
  %337 = vmatprep.subr.bf16.mxu0 0
  %338 = vmatpush1.bf16.xpose.msra.mxu0 0
  %339 = vmatprep.subr.bf16.mxu0 0
  %340 = vmatpush1.bf16.xpose.msra.mxu0 %v325
  %341 = vmatprep.subr.bf16.mxu0 0
  %342 = vmatpush1.bf16.xpose.msra.mxu0 %v322
  %343 = vmatprep.subr.bf16.mxu0 0
  %344 = vmatpush2.bf16.xpose.msra.mxu0 0
  %345 = vmatprep.subr.bf16.mxu0 0
  %346 = vmatpush2.bf16.xpose.msra.mxu0 0
  %347 = vmatprep.subr.bf16.mxu0 0
  %348 = vmatpush2.bf16.xpose.msra.mxu0 0
  %349 = vmatprep.subr.bf16.mxu0 0
  %350 = vmatpush2.bf16.xpose.msra.mxu0 0
  %351 = vmatprep.subr.bf16.mxu0 0
  %352 = vmatpush2.bf16.xpose.msra.mxu0 0
  %353 = vmatprep.subr.bf16.mxu0 0
  %354 = vmatpush2.bf16.xpose.msra.mxu0 0
  %355 = vmatprep.subr.bf16.mxu0 0
  %356 = vmatpush2.bf16.xpose.msra.mxu0 0
  %357 = vmatprep.subr.bf16.mxu0 0
  %358 = vmatpush2.bf16.xpose.msra.mxu0 0
  %359 = vmatprep.mubr.bf16.mxu0 0
  %360 = vmatmul.mubr.bf16.gmra.mxu0 %v319
  %v361 = vpop.f32.mrf.mxu0
  %v362 = vadd.f32 %v300, %v361
  %v363 = vpop.f32.mrf.mxu0
  %v364 = vpop.f32.mrf.mxu0
  %v365 = vpop.f32.mrf.mxu0
  %366 = vdwg.mxu0
  %s367 = scalar_lea.vmem [#allocation2], 32
  %v368 = vld [vmem:[%s367] sm:$0xf]
  %v369 = vld [vmem:[%s367 + $0x4] sm:$0xf]
  %v370 = vld [vmem:[%s367 + $0x8] sm:$0xf]
  %v371 = vld [vmem:[%s367 + $0xc] sm:$0xf]
  %v372 = vrot.slane %v239, 2
  %v373 = vrot.slane %v240, 1
  %v374 = vsel %vm242, %v373, %v372
  %v375 = vpack.c.b16 %v374, %v374
  %v380 = vunpack.c.l.b16 %v368
  %v381 = vunpack.c.l.b16 %v369
  %v382 = vunpack.c.l.b16 %v370
  %v383 = vunpack.c.l.b16 %v371
  %v384 = vpack.c.b16 %v381, %v380
  %v385 = vpack.c.b16 %v383, %v382
  %v387 = vsel %vm255, %v375, 0
  %v390 = vsel %vm255, %v384, 0
  %v393 = vsel %vm255, %v385, 0
  %395 = vmatprep.subr.bf16.mxu0 0
  %396 = vmatpush1.bf16.xpose.msra.mxu0 0
  %397 = vmatprep.subr.bf16.mxu0 0
  %398 = vmatpush1.bf16.xpose.msra.mxu0 0
  %399 = vmatprep.subr.bf16.mxu0 0
  %400 = vmatpush1.bf16.xpose.msra.mxu0 0
  %401 = vmatprep.subr.bf16.mxu0 0
  %402 = vmatpush1.bf16.xpose.msra.mxu0 0
  %403 = vmatprep.subr.bf16.mxu0 0
  %404 = vmatpush1.bf16.xpose.msra.mxu0 0
  %405 = vmatprep.subr.bf16.mxu0 0
  %406 = vmatpush1.bf16.xpose.msra.mxu0 0
  %407 = vmatprep.subr.bf16.mxu0 0
  %408 = vmatpush1.bf16.xpose.msra.mxu0 %v393
  %409 = vmatprep.subr.bf16.mxu0 0
  %410 = vmatpush1.bf16.xpose.msra.mxu0 %v390
  %411 = vmatprep.subr.bf16.mxu0 0
  %412 = vmatpush2.bf16.xpose.msra.mxu0 0
  %413 = vmatprep.subr.bf16.mxu0 0
  %414 = vmatpush2.bf16.xpose.msra.mxu0 0
  %415 = vmatprep.subr.bf16.mxu0 0
  %416 = vmatpush2.bf16.xpose.msra.mxu0 0
  %417 = vmatprep.subr.bf16.mxu0 0
  %418 = vmatpush2.bf16.xpose.msra.mxu0 0
  %419 = vmatprep.subr.bf16.mxu0 0
  %420 = vmatpush2.bf16.xpose.msra.mxu0 0
  %421 = vmatprep.subr.bf16.mxu0 0
  %422 = vmatpush2.bf16.xpose.msra.mxu0 0
  %423 = vmatprep.subr.bf16.mxu0 0
  %424 = vmatpush2.bf16.xpose.msra.mxu0 0
  %425 = vmatprep.subr.bf16.mxu0 0
  %426 = vmatpush2.bf16.xpose.msra.mxu0 0
  %427 = vmatprep.mubr.bf16.mxu0 0
  %428 = vmatmul.mubr.bf16.gmra.mxu0 %v387
  %v429 = vpop.f32.mrf.mxu0
  %v430 = vadd.f32 0.0, %v429
  %v431 = vpop.f32.mrf.mxu0
  %v432 = vpop.f32.mrf.mxu0
  %v433 = vpop.f32.mrf.mxu0
  %434 = vdwg.mxu0
  %v435 = vadd.f32 %v362, %v430
  %s436 = scalar_lea.vmem [#allocation2], 48
  %v437 = vld [vmem:[%s436] sm:$0xf]
  %v438 = vld [vmem:[%s436 + $0x4] sm:$0xf]
  %v439 = vld [vmem:[%s436 + $0x8] sm:$0xf]
  %v440 = vld [vmem:[%s436 + $0xc] sm:$0xf]
  %v441 = vrot.slane %v239, 3
  %v442 = vrot.slane %v240, 2
  %v443 = vsel %vm242, %v442, %v441
  %v444 = vpack.c.b16 %v443, %v443
  %v449 = vunpack.c.l.b16 %v437
  %v450 = vunpack.c.l.b16 %v438
  %v451 = vunpack.c.l.b16 %v439
  %v452 = vunpack.c.l.b16 %v440
  %v453 = vpack.c.b16 %v450, %v449
  %v454 = vpack.c.b16 %v452, %v451
  %v456 = vsel %vm255, %v444, 0
  %v459 = vsel %vm255, %v453, 0
  %v462 = vsel %vm255, %v454, 0
  %464 = vmatprep.subr.bf16.mxu0 0
  %465 = vmatpush1.bf16.xpose.msra.mxu0 0
  %466 = vmatprep.subr.bf16.mxu0 0
  %467 = vmatpush1.bf16.xpose.msra.mxu0 0
  %468 = vmatprep.subr.bf16.mxu0 0
  %469 = vmatpush1.bf16.xpose.msra.mxu0 0
  %470 = vmatprep.subr.bf16.mxu0 0
  %471 = vmatpush1.bf16.xpose.msra.mxu0 0
  %472 = vmatprep.subr.bf16.mxu0 0
  %473 = vmatpush1.bf16.xpose.msra.mxu0 0
  %474 = vmatprep.subr.bf16.mxu0 0
  %475 = vmatpush1.bf16.xpose.msra.mxu0 0
  %476 = vmatprep.subr.bf16.mxu0 0
  %477 = vmatpush1.bf16.xpose.msra.mxu0 %v462
  %478 = vmatprep.subr.bf16.mxu0 0
  %479 = vmatpush1.bf16.xpose.msra.mxu0 %v459
  %480 = vmatprep.subr.bf16.mxu0 0
  %481 = vmatpush2.bf16.xpose.msra.mxu0 0
  %482 = vmatprep.subr.bf16.mxu0 0
  %483 = vmatpush2.bf16.xpose.msra.mxu0 0
  %484 = vmatprep.subr.bf16.mxu0 0
  %485 = vmatpush2.bf16.xpose.msra.mxu0 0
  %486 = vmatprep.subr.bf16.mxu0 0
  %487 = vmatpush2.bf16.xpose.msra.mxu0 0
  %488 = vmatprep.subr.bf16.mxu0 0
  %489 = vmatpush2.bf16.xpose.msra.mxu0 0
  %490 = vmatprep.subr.bf16.mxu0 0
  %491 = vmatpush2.bf16.xpose.msra.mxu0 0
  %492 = vmatprep.subr.bf16.mxu0 0
  %493 = vmatpush2.bf16.xpose.msra.mxu0 0
  %494 = vmatprep.subr.bf16.mxu0 0
  %495 = vmatpush2.bf16.xpose.msra.mxu0 0
  %496 = vmatprep.mubr.bf16.mxu0 0
  %497 = vmatmul.mubr.bf16.gmra.mxu0 %v456
  %v498 = vpop.f32.mrf.mxu0
  %v499 = vadd.f32 0.0, %v498
  %v500 = vpop.f32.mrf.mxu0
  %v501 = vpop.f32.mrf.mxu0
  %v502 = vpop.f32.mrf.mxu0
  %503 = vdwg.mxu0
  %v504 = vadd.f32 %v435, %v499
  %s505 = scalar_lea.vmem [#allocation2], 64
  %v506 = vld [vmem:[%s505] sm:$0xf]
  %v507 = vld [vmem:[%s505 + $0x4] sm:$0xf]
  %v508 = vld [vmem:[%s505 + $0x8] sm:$0xf]
  %v509 = vld [vmem:[%s505 + $0xc] sm:$0xf]
  %v510 = vrot.slane %v239, 4
  %v511 = vrot.slane %v240, 3
  %v512 = vsel %vm242, %v511, %v510
  %v513 = vpack.c.b16 %v512, %v512
  %v518 = vunpack.c.l.b16 %v506
  %v519 = vunpack.c.l.b16 %v507
  %v520 = vunpack.c.l.b16 %v508
  %v521 = vunpack.c.l.b16 %v509
  %v522 = vpack.c.b16 %v519, %v518
  %v523 = vpack.c.b16 %v521, %v520
  %v525 = vsel %vm255, %v513, 0
  %v528 = vsel %vm255, %v522, 0
  %v531 = vsel %vm255, %v523, 0
  %533 = vmatprep.subr.bf16.mxu0 0
  %534 = vmatpush1.bf16.xpose.msra.mxu0 0
  %535 = vmatprep.subr.bf16.mxu0 0
  %536 = vmatpush1.bf16.xpose.msra.mxu0 0
  %537 = vmatprep.subr.bf16.mxu0 0
  %538 = vmatpush1.bf16.xpose.msra.mxu0 0
  %539 = vmatprep.subr.bf16.mxu0 0
  %540 = vmatpush1.bf16.xpose.msra.mxu0 0
  %541 = vmatprep.subr.bf16.mxu0 0
  %542 = vmatpush1.bf16.xpose.msra.mxu0 0
  %543 = vmatprep.subr.bf16.mxu0 0
  %544 = vmatpush1.bf16.xpose.msra.mxu0 0
  %545 = vmatprep.subr.bf16.mxu0 0
  %546 = vmatpush1.bf16.xpose.msra.mxu0 %v531
  %547 = vmatprep.subr.bf16.mxu0 0
  %548 = vmatpush1.bf16.xpose.msra.mxu0 %v528
  %549 = vmatprep.subr.bf16.mxu0 0
  %550 = vmatpush2.bf16.xpose.msra.mxu0 0
  %551 = vmatprep.subr.bf16.mxu0 0
  %552 = vmatpush2.bf16.xpose.msra.mxu0 0
  %553 = vmatprep.subr.bf16.mxu0 0
  %554 = vmatpush2.bf16.xpose.msra.mxu0 0
  %555 = vmatprep.subr.bf16.mxu0 0
  %556 = vmatpush2.bf16.xpose.msra.mxu0 0
  %557 = vmatprep.subr.bf16.mxu0 0
  %558 = vmatpush2.bf16.xpose.msra.mxu0 0
  %559 = vmatprep.subr.bf16.mxu0 0
  %560 = vmatpush2.bf16.xpose.msra.mxu0 0
  %561 = vmatprep.subr.bf16.mxu0 0
  %562 = vmatpush2.bf16.xpose.msra.mxu0 0
  %563 = vmatprep.subr.bf16.mxu0 0
  %564 = vmatpush2.bf16.xpose.msra.mxu0 0
  %565 = vmatprep.mubr.bf16.mxu0 0
  %566 = vmatmul.mubr.bf16.gmra.mxu0 %v525
  %v567 = vpop.f32.mrf.mxu0
  %v568 = vadd.f32 0.0, %v567
  %v569 = vpop.f32.mrf.mxu0
  %v570 = vpop.f32.mrf.mxu0
  %v571 = vpop.f32.mrf.mxu0
  %572 = vdwg.mxu0
  %v573 = vadd.f32 %v504, %v568
  %s574 = scalar_lea.vmem [#allocation2], 80
  %v575 = vld [vmem:[%s574] sm:$0xf]
  %v576 = vld [vmem:[%s574 + $0x4] sm:$0xf]
  %v577 = vld [vmem:[%s574 + $0x8] sm:$0xf]
  %v578 = vld [vmem:[%s574 + $0xc] sm:$0xf]
  %v579 = vrot.slane %v239, 5
  %v580 = vrot.slane %v240, 4
  %v581 = vsel %vm242, %v580, %v579
  %v582 = vpack.c.b16 %v581, %v581
  %v587 = vunpack.c.l.b16 %v575
  %v588 = vunpack.c.l.b16 %v576
  %v589 = vunpack.c.l.b16 %v577
  %v590 = vunpack.c.l.b16 %v578
  %v591 = vpack.c.b16 %v588, %v587
  %v592 = vpack.c.b16 %v590, %v589
  %v594 = vsel %vm255, %v582, 0
  %v597 = vsel %vm255, %v591, 0
  %v600 = vsel %vm255, %v592, 0
  %602 = vmatprep.subr.bf16.mxu0 0
  %603 = vmatpush1.bf16.xpose.msra.mxu0 0
  %604 = vmatprep.subr.bf16.mxu0 0
  %605 = vmatpush1.bf16.xpose.msra.mxu0 0
  %606 = vmatprep.subr.bf16.mxu0 0
  %607 = vmatpush1.bf16.xpose.msra.mxu0 0
  %608 = vmatprep.subr.bf16.mxu0 0
  %609 = vmatpush1.bf16.xpose.msra.mxu0 0
  %610 = vmatprep.subr.bf16.mxu0 0
  %611 = vmatpush1.bf16.xpose.msra.mxu0 0
  %612 = vmatprep.subr.bf16.mxu0 0
  %613 = vmatpush1.bf16.xpose.msra.mxu0 0
  %614 = vmatprep.subr.bf16.mxu0 0
  %615 = vmatpush1.bf16.xpose.msra.mxu0 %v600
  %616 = vmatprep.subr.bf16.mxu0 0
  %617 = vmatpush1.bf16.xpose.msra.mxu0 %v597
  %618 = vmatprep.subr.bf16.mxu0 0
  %619 = vmatpush2.bf16.xpose.msra.mxu0 0
  %620 = vmatprep.subr.bf16.mxu0 0
  %621 = vmatpush2.bf16.xpose.msra.mxu0 0
  %622 = vmatprep.subr.bf16.mxu0 0
  %623 = vmatpush2.bf16.xpose.msra.mxu0 0
  %624 = vmatprep.subr.bf16.mxu0 0
  %625 = vmatpush2.bf16.xpose.msra.mxu0 0
  %626 = vmatprep.subr.bf16.mxu0 0
  %627 = vmatpush2.bf16.xpose.msra.mxu0 0
  %628 = vmatprep.subr.bf16.mxu0 0
  %629 = vmatpush2.bf16.xpose.msra.mxu0 0
  %630 = vmatprep.subr.bf16.mxu0 0
  %631 = vmatpush2.bf16.xpose.msra.mxu0 0
  %632 = vmatprep.subr.bf16.mxu0 0
  %633 = vmatpush2.bf16.xpose.msra.mxu0 0
  %634 = vmatprep.mubr.bf16.mxu0 0
  %635 = vmatmul.mubr.bf16.gmra.mxu0 %v594
  %v636 = vpop.f32.mrf.mxu0
  %v637 = vadd.f32 0.0, %v636
  %v638 = vpop.f32.mrf.mxu0
  %v639 = vpop.f32.mrf.mxu0
  %v640 = vpop.f32.mrf.mxu0
  %641 = vdwg.mxu0
  %v642 = vadd.f32 %v573, %v637
  %s643 = scalar_lea.vmem [#allocation2], 96
  %v644 = vld [vmem:[%s643] sm:$0xf]
  %v645 = vld [vmem:[%s643 + $0x4] sm:$0xf]
  %v646 = vld [vmem:[%s643 + $0x8] sm:$0xf]
  %v647 = vld [vmem:[%s643 + $0xc] sm:$0xf]
  %v648 = vrot.slane %v239, 6
  %v649 = vrot.slane %v240, 5
  %v650 = vsel %vm242, %v649, %v648
  %v651 = vpack.c.b16 %v650, %v650
  %v656 = vunpack.c.l.b16 %v644
  %v657 = vunpack.c.l.b16 %v645
  %v658 = vunpack.c.l.b16 %v646
  %v659 = vunpack.c.l.b16 %v647
  %v660 = vpack.c.b16 %v657, %v656
  %v661 = vpack.c.b16 %v659, %v658
  %v663 = vsel %vm255, %v651, 0
  %v666 = vsel %vm255, %v660, 0
  %v669 = vsel %vm255, %v661, 0
  %671 = vmatprep.subr.bf16.mxu0 0
  %672 = vmatpush1.bf16.xpose.msra.mxu0 0
  %673 = vmatprep.subr.bf16.mxu0 0
  %674 = vmatpush1.bf16.xpose.msra.mxu0 0
  %675 = vmatprep.subr.bf16.mxu0 0
  %676 = vmatpush1.bf16.xpose.msra.mxu0 0
  %677 = vmatprep.subr.bf16.mxu0 0
  %678 = vmatpush1.bf16.xpose.msra.mxu0 0
  %679 = vmatprep.subr.bf16.mxu0 0
  %680 = vmatpush1.bf16.xpose.msra.mxu0 0
  %681 = vmatprep.subr.bf16.mxu0 0
  %682 = vmatpush1.bf16.xpose.msra.mxu0 0
  %683 = vmatprep.subr.bf16.mxu0 0
  %684 = vmatpush1.bf16.xpose.msra.mxu0 %v669
  %685 = vmatprep.subr.bf16.mxu0 0
  %686 = vmatpush1.bf16.xpose.msra.mxu0 %v666
  %687 = vmatprep.subr.bf16.mxu0 0
  %688 = vmatpush2.bf16.xpose.msra.mxu0 0
  %689 = vmatprep.subr.bf16.mxu0 0
  %690 = vmatpush2.bf16.xpose.msra.mxu0 0
  %691 = vmatprep.subr.bf16.mxu0 0
  %692 = vmatpush2.bf16.xpose.msra.mxu0 0
  %693 = vmatprep.subr.bf16.mxu0 0
  %694 = vmatpush2.bf16.xpose.msra.mxu0 0
  %695 = vmatprep.subr.bf16.mxu0 0
  %696 = vmatpush2.bf16.xpose.msra.mxu0 0
  %697 = vmatprep.subr.bf16.mxu0 0
  %698 = vmatpush2.bf16.xpose.msra.mxu0 0
  %699 = vmatprep.subr.bf16.mxu0 0
  %700 = vmatpush2.bf16.xpose.msra.mxu0 0
  %701 = vmatprep.subr.bf16.mxu0 0
  %702 = vmatpush2.bf16.xpose.msra.mxu0 0
  %703 = vmatprep.mubr.bf16.mxu0 0
  %704 = vmatmul.mubr.bf16.gmra.mxu0 %v663
  %v705 = vpop.f32.mrf.mxu0
  %v706 = vadd.f32 0.0, %v705
  %v707 = vpop.f32.mrf.mxu0
  %v708 = vpop.f32.mrf.mxu0
  %v709 = vpop.f32.mrf.mxu0
  %710 = vdwg.mxu0
  %v711 = vadd.f32 %v642, %v706
  %s712 = scalar_lea.vmem [#allocation2], 112
  %v713 = vld [vmem:[%s712] sm:$0xf]
  %v714 = vld [vmem:[%s712 + $0x4] sm:$0xf]
  %v715 = vld [vmem:[%s712 + $0x8] sm:$0xf]
  %v716 = vld [vmem:[%s712 + $0xc] sm:$0xf]
  %v717 = vrot.slane %v239, 7
  %v718 = vrot.slane %v240, 6
  %v719 = vsel %vm242, %v718, %v717
  %v720 = vpack.c.b16 %v719, %v719
  %v725 = vunpack.c.l.b16 %v713
  %v726 = vunpack.c.l.b16 %v714
  %v727 = vunpack.c.l.b16 %v715
  %v728 = vunpack.c.l.b16 %v716
  %v729 = vpack.c.b16 %v726, %v725
  %v730 = vpack.c.b16 %v728, %v727
  %v732 = vsel %vm255, %v720, 0
  %v735 = vsel %vm255, %v729, 0
  %v738 = vsel %vm255, %v730, 0
  %740 = vmatprep.subr.bf16.mxu0 0
  %741 = vmatpush1.bf16.xpose.msra.mxu0 0
  %742 = vmatprep.subr.bf16.mxu0 0
  %743 = vmatpush1.bf16.xpose.msra.mxu0 0
  %744 = vmatprep.subr.bf16.mxu0 0
  %745 = vmatpush1.bf16.xpose.msra.mxu0 0
  %746 = vmatprep.subr.bf16.mxu0 0
  %747 = vmatpush1.bf16.xpose.msra.mxu0 0
  %748 = vmatprep.subr.bf16.mxu0 0
  %749 = vmatpush1.bf16.xpose.msra.mxu0 0
  %750 = vmatprep.subr.bf16.mxu0 0
  %751 = vmatpush1.bf16.xpose.msra.mxu0 0
  %752 = vmatprep.subr.bf16.mxu0 0
  %753 = vmatpush1.bf16.xpose.msra.mxu0 %v738
  %754 = vmatprep.subr.bf16.mxu0 0
  %755 = vmatpush1.bf16.xpose.msra.mxu0 %v735
  %756 = vmatprep.subr.bf16.mxu0 0
  %757 = vmatpush2.bf16.xpose.msra.mxu0 0
  %758 = vmatprep.subr.bf16.mxu0 0
  %759 = vmatpush2.bf16.xpose.msra.mxu0 0
  %760 = vmatprep.subr.bf16.mxu0 0
  %761 = vmatpush2.bf16.xpose.msra.mxu0 0
  %762 = vmatprep.subr.bf16.mxu0 0
  %763 = vmatpush2.bf16.xpose.msra.mxu0 0
  %764 = vmatprep.subr.bf16.mxu0 0
  %765 = vmatpush2.bf16.xpose.msra.mxu0 0
  %766 = vmatprep.subr.bf16.mxu0 0
  %767 = vmatpush2.bf16.xpose.msra.mxu0 0
  %768 = vmatprep.subr.bf16.mxu0 0
  %769 = vmatpush2.bf16.xpose.msra.mxu0 0
  %770 = vmatprep.subr.bf16.mxu0 0
  %771 = vmatpush2.bf16.xpose.msra.mxu0 0
  %772 = vmatprep.mubr.bf16.mxu0 0
  %773 = vmatmul.mubr.bf16.gmra.mxu0 %v732
  %v774 = vpop.f32.mrf.mxu0
  %v775 = vadd.f32 0.0, %v774
  %v776 = vpop.f32.mrf.mxu0
  %v777 = vpop.f32.mrf.mxu0
  %v778 = vpop.f32.mrf.mxu0
  %779 = vdwg.mxu0
  %v780 = vadd.f32 %v711, %v775
  %v781 = vpack.c.bf16 %v214, %v214
  %v782 = vpack.c.bf16 %v218, %v218
  %s783 = scalar_lea.vmem [#allocation2], 128
  %v784 = vld [vmem:[%s783] sm:$0xf]
  %v785 = vld [vmem:[%s783 + $0x4] sm:$0xf]
  %v786 = vld [vmem:[%s783 + $0x8] sm:$0xf]
  %v787 = vld [vmem:[%s783 + $0xc] sm:$0xf]
  %v790 = vunpack.c.l.b16 %v781
  %v791 = vunpack.c.l.b16 %v782
  %v792 = vrot.slane %v791, 7
  %v793 = vsel %vm242, %v792, %v790
  %v794 = vpack.c.b16 %v793, %v793
  %v799 = vunpack.c.l.b16 %v784
  %v800 = vunpack.c.l.b16 %v785
  %v801 = vunpack.c.l.b16 %v786
  %v802 = vunpack.c.l.b16 %v787
  %v803 = vpack.c.b16 %v800, %v799
  %v804 = vpack.c.b16 %v802, %v801
  %v806 = vsel %vm255, %v794, 0
  %v809 = vsel %vm255, %v803, 0
  %v812 = vsel %vm255, %v804, 0
  %814 = vmatprep.subr.bf16.mxu0 0
  %815 = vmatpush1.bf16.xpose.msra.mxu0 0
  %816 = vmatprep.subr.bf16.mxu0 0
  %817 = vmatpush1.bf16.xpose.msra.mxu0 0
  %818 = vmatprep.subr.bf16.mxu0 0
  %819 = vmatpush1.bf16.xpose.msra.mxu0 0
  %820 = vmatprep.subr.bf16.mxu0 0
  %821 = vmatpush1.bf16.xpose.msra.mxu0 0
  %822 = vmatprep.subr.bf16.mxu0 0
  %823 = vmatpush1.bf16.xpose.msra.mxu0 0
  %824 = vmatprep.subr.bf16.mxu0 0
  %825 = vmatpush1.bf16.xpose.msra.mxu0 0
  %826 = vmatprep.subr.bf16.mxu0 0
  %827 = vmatpush1.bf16.xpose.msra.mxu0 %v812
  %828 = vmatprep.subr.bf16.mxu0 0
  %829 = vmatpush1.bf16.xpose.msra.mxu0 %v809
  %830 = vmatprep.subr.bf16.mxu0 0
  %831 = vmatpush2.bf16.xpose.msra.mxu0 0
  %832 = vmatprep.subr.bf16.mxu0 0
  %833 = vmatpush2.bf16.xpose.msra.mxu0 0
  %834 = vmatprep.subr.bf16.mxu0 0
  %835 = vmatpush2.bf16.xpose.msra.mxu0 0
  %836 = vmatprep.subr.bf16.mxu0 0
  %837 = vmatpush2.bf16.xpose.msra.mxu0 0
  %838 = vmatprep.subr.bf16.mxu0 0
  %839 = vmatpush2.bf16.xpose.msra.mxu0 0
  %840 = vmatprep.subr.bf16.mxu0 0
  %841 = vmatpush2.bf16.xpose.msra.mxu0 0
  %842 = vmatprep.subr.bf16.mxu0 0
  %843 = vmatpush2.bf16.xpose.msra.mxu0 0
  %844 = vmatprep.subr.bf16.mxu0 0
  %845 = vmatpush2.bf16.xpose.msra.mxu0 0
  %846 = vmatprep.mubr.bf16.mxu0 0
  %847 = vmatmul.mubr.bf16.gmra.mxu0 %v806
  %v848 = vpop.f32.mrf.mxu0
  %v849 = vadd.f32 0.0, %v848
  %v850 = vpop.f32.mrf.mxu0
  %v851 = vpop.f32.mrf.mxu0
  %v852 = vpop.f32.mrf.mxu0
  %853 = vdwg.mxu0
  %v854 = vadd.f32 %v780, %v849
  %s855 = scalar_lea.vmem [#allocation2], 144
  %v856 = vld [vmem:[%s855] sm:$0xf]
  %v857 = vld [vmem:[%s855 + $0x4] sm:$0xf]
  %v858 = vld [vmem:[%s855 + $0x8] sm:$0xf]
  %v859 = vld [vmem:[%s855 + $0xc] sm:$0xf]
  %v860 = vrot.slane %v790, 1
  %v861 = vsel %vm242, %v791, %v860
  %v862 = vpack.c.b16 %v861, %v861
  %v867 = vunpack.c.l.b16 %v856
  %v868 = vunpack.c.l.b16 %v857
  %v869 = vunpack.c.l.b16 %v858
  %v870 = vunpack.c.l.b16 %v859
  %v871 = vpack.c.b16 %v868, %v867
  %v872 = vpack.c.b16 %v870, %v869
  %v874 = vsel %vm255, %v862, 0
  %v877 = vsel %vm255, %v871, 0
  %v880 = vsel %vm255, %v872, 0
  %882 = vmatprep.subr.bf16.mxu0 0
  %883 = vmatpush1.bf16.xpose.msra.mxu0 0
  %884 = vmatprep.subr.bf16.mxu0 0
  %885 = vmatpush1.bf16.xpose.msra.mxu0 0
  %886 = vmatprep.subr.bf16.mxu0 0
  %887 = vmatpush1.bf16.xpose.msra.mxu0 0
  %888 = vmatprep.subr.bf16.mxu0 0
  %889 = vmatpush1.bf16.xpose.msra.mxu0 0
  %890 = vmatprep.subr.bf16.mxu0 0
  %891 = vmatpush1.bf16.xpose.msra.mxu0 0
  %892 = vmatprep.subr.bf16.mxu0 0
  %893 = vmatpush1.bf16.xpose.msra.mxu0 0
  %894 = vmatprep.subr.bf16.mxu0 0
  %895 = vmatpush1.bf16.xpose.msra.mxu0 %v880
  %896 = vmatprep.subr.bf16.mxu0 0
  %897 = vmatpush1.bf16.xpose.msra.mxu0 %v877
  %898 = vmatprep.subr.bf16.mxu0 0
  %899 = vmatpush2.bf16.xpose.msra.mxu0 0
  %900 = vmatprep.subr.bf16.mxu0 0
  %901 = vmatpush2.bf16.xpose.msra.mxu0 0
  %902 = vmatprep.subr.bf16.mxu0 0
  %903 = vmatpush2.bf16.xpose.msra.mxu0 0
  %904 = vmatprep.subr.bf16.mxu0 0
  %905 = vmatpush2.bf16.xpose.msra.mxu0 0
  %906 = vmatprep.subr.bf16.mxu0 0
  %907 = vmatpush2.bf16.xpose.msra.mxu0 0
  %908 = vmatprep.subr.bf16.mxu0 0
  %909 = vmatpush2.bf16.xpose.msra.mxu0 0
  %910 = vmatprep.subr.bf16.mxu0 0
  %911 = vmatpush2.bf16.xpose.msra.mxu0 0
  %912 = vmatprep.subr.bf16.mxu0 0
  %913 = vmatpush2.bf16.xpose.msra.mxu0 0
  %914 = vmatprep.mubr.bf16.mxu0 0
  %915 = vmatmul.mubr.bf16.gmra.mxu0 %v874
  %v916 = vpop.f32.mrf.mxu0
  %v917 = vadd.f32 0.0, %v916
  %v918 = vpop.f32.mrf.mxu0
  %v919 = vpop.f32.mrf.mxu0
  %v920 = vpop.f32.mrf.mxu0
  %921 = vdwg.mxu0
  %v922 = vadd.f32 %v854, %v917
  %s923 = scalar_lea.vmem [#allocation2], 160
  %v924 = vld [vmem:[%s923] sm:$0xf]
  %v925 = vld [vmem:[%s923 + $0x4] sm:$0xf]
  %v926 = vld [vmem:[%s923 + $0x8] sm:$0xf]
  %v927 = vld [vmem:[%s923 + $0xc] sm:$0xf]
  %v928 = vrot.slane %v790, 2
  %v929 = vrot.slane %v791, 1
  %v930 = vsel %vm242, %v929, %v928
  %v931 = vpack.c.b16 %v930, %v930
  %v936 = vunpack.c.l.b16 %v924
  %v937 = vunpack.c.l.b16 %v925
  %v938 = vunpack.c.l.b16 %v926
  %v939 = vunpack.c.l.b16 %v927
  %v940 = vpack.c.b16 %v937, %v936
  %v941 = vpack.c.b16 %v939, %v938
  %v943 = vsel %vm255, %v931, 0
  %v946 = vsel %vm255, %v940, 0
  %v949 = vsel %vm255, %v941, 0
  %951 = vmatprep.subr.bf16.mxu0 0
  %952 = vmatpush1.bf16.xpose.msra.mxu0 0
  %953 = vmatprep.subr.bf16.mxu0 0
  %954 = vmatpush1.bf16.xpose.msra.mxu0 0
  %955 = vmatprep.subr.bf16.mxu0 0
  %956 = vmatpush1.bf16.xpose.msra.mxu0 0
  %957 = vmatprep.subr.bf16.mxu0 0
  %958 = vmatpush1.bf16.xpose.msra.mxu0 0
  %959 = vmatprep.subr.bf16.mxu0 0
  %960 = vmatpush1.bf16.xpose.msra.mxu0 0
  %961 = vmatprep.subr.bf16.mxu0 0
  %962 = vmatpush1.bf16.xpose.msra.mxu0 0
  %963 = vmatprep.subr.bf16.mxu0 0
  %964 = vmatpush1.bf16.xpose.msra.mxu0 %v949
  %965 = vmatprep.subr.bf16.mxu0 0
  %966 = vmatpush1.bf16.xpose.msra.mxu0 %v946
  %967 = vmatprep.subr.bf16.mxu0 0
  %968 = vmatpush2.bf16.xpose.msra.mxu0 0
  %969 = vmatprep.subr.bf16.mxu0 0
  %970 = vmatpush2.bf16.xpose.msra.mxu0 0
  %971 = vmatprep.subr.bf16.mxu0 0
  %972 = vmatpush2.bf16.xpose.msra.mxu0 0
  %973 = vmatprep.subr.bf16.mxu0 0
  %974 = vmatpush2.bf16.xpose.msra.mxu0 0
  %975 = vmatprep.subr.bf16.mxu0 0
  %976 = vmatpush2.bf16.xpose.msra.mxu0 0
  %977 = vmatprep.subr.bf16.mxu0 0
  %978 = vmatpush2.bf16.xpose.msra.mxu0 0
  %979 = vmatprep.subr.bf16.mxu0 0
  %980 = vmatpush2.bf16.xpose.msra.mxu0 0
  %981 = vmatprep.subr.bf16.mxu0 0
  %982 = vmatpush2.bf16.xpose.msra.mxu0 0
  %983 = vmatprep.mubr.bf16.mxu0 0
  %984 = vmatmul.mubr.bf16.gmra.mxu0 %v943
  %v985 = vpop.f32.mrf.mxu0
  %v986 = vadd.f32 0.0, %v985
  %v987 = vpop.f32.mrf.mxu0
  %v988 = vpop.f32.mrf.mxu0
  %v989 = vpop.f32.mrf.mxu0
  %990 = vdwg.mxu0
  %v991 = vadd.f32 %v922, %v986
  %s992 = scalar_lea.vmem [#allocation2], 176
  %v993 = vld [vmem:[%s992] sm:$0xf]
  %v994 = vld [vmem:[%s992 + $0x4] sm:$0xf]
  %v995 = vld [vmem:[%s992 + $0x8] sm:$0xf]
  %v996 = vld [vmem:[%s992 + $0xc] sm:$0xf]
  %v997 = vrot.slane %v790, 3
  %v998 = vrot.slane %v791, 2
  %v999 = vsel %vm242, %v998, %v997
  %v1000 = vpack.c.b16 %v999, %v999
  %v1005 = vunpack.c.l.b16 %v993
  %v1006 = vunpack.c.l.b16 %v994
  %v1007 = vunpack.c.l.b16 %v995
  %v1008 = vunpack.c.l.b16 %v996
  %v1009 = vpack.c.b16 %v1006, %v1005
  %v1010 = vpack.c.b16 %v1008, %v1007
  %v1012 = vsel %vm255, %v1000, 0
  %v1015 = vsel %vm255, %v1009, 0
  %v1018 = vsel %vm255, %v1010, 0
  %1020 = vmatprep.subr.bf16.mxu0 0
  %1021 = vmatpush1.bf16.xpose.msra.mxu0 0
  %1022 = vmatprep.subr.bf16.mxu0 0
  %1023 = vmatpush1.bf16.xpose.msra.mxu0 0
  %1024 = vmatprep.subr.bf16.mxu0 0
  %1025 = vmatpush1.bf16.xpose.msra.mxu0 0
  %1026 = vmatprep.subr.bf16.mxu0 0
  %1027 = vmatpush1.bf16.xpose.msra.mxu0 0
  %1028 = vmatprep.subr.bf16.mxu0 0
  %1029 = vmatpush1.bf16.xpose.msra.mxu0 0
  %1030 = vmatprep.subr.bf16.mxu0 0
  %1031 = vmatpush1.bf16.xpose.msra.mxu0 0
  %1032 = vmatprep.subr.bf16.mxu0 0
  %1033 = vmatpush1.bf16.xpose.msra.mxu0 %v1018
  %1034 = vmatprep.subr.bf16.mxu0 0
  %1035 = vmatpush1.bf16.xpose.msra.mxu0 %v1015
  %1036 = vmatprep.subr.bf16.mxu0 0
  %1037 = vmatpush2.bf16.xpose.msra.mxu0 0
  %1038 = vmatprep.subr.bf16.mxu0 0
  %1039 = vmatpush2.bf16.xpose.msra.mxu0 0
  %1040 = vmatprep.subr.bf16.mxu0 0
  %1041 = vmatpush2.bf16.xpose.msra.mxu0 0
  %1042 = vmatprep.subr.bf16.mxu0 0
  %1043 = vmatpush2.bf16.xpose.msra.mxu0 0
  %1044 = vmatprep.subr.bf16.mxu0 0
  %1045 = vmatpush2.bf16.xpose.msra.mxu0 0
  %1046 = vmatprep.subr.bf16.mxu0 0
  %1047 = vmatpush2.bf16.xpose.msra.mxu0 0
  %1048 = vmatprep.subr.bf16.mxu0 0
  %1049 = vmatpush2.bf16.xpose.msra.mxu0 0
  %1050 = vmatprep.subr.bf16.mxu0 0
  %1051 = vmatpush2.bf16.xpose.msra.mxu0 0
  %1052 = vmatprep.mubr.bf16.mxu0 0
  %1053 = vmatmul.mubr.bf16.gmra.mxu0 %v1012
  %v1054 = vpop.f32.mrf.mxu0
  %v1055 = vadd.f32 0.0, %v1054
  %v1056 = vpop.f32.mrf.mxu0
  %v1057 = vpop.f32.mrf.mxu0
  %v1058 = vpop.f32.mrf.mxu0
  %1059 = vdwg.mxu0
  %v1060 = vadd.f32 %v991, %v1055
  %s1061 = scalar_lea.vmem [#allocation2], 192
  %v1062 = vld [vmem:[%s1061] sm:$0xf]
  %v1063 = vld [vmem:[%s1061 + $0x4] sm:$0xf]
  %v1064 = vld [vmem:[%s1061 + $0x8] sm:$0xf]
  %v1065 = vld [vmem:[%s1061 + $0xc] sm:$0xf]
  %v1066 = vrot.slane %v790, 4
  %v1067 = vrot.slane %v791, 3
  %v1068 = vsel %vm242, %v1067, %v1066
  %v1069 = vpack.c.b16 %v1068, %v1068
  %v1074 = vunpack.c.l.b16 %v1062
  %v1075 = vunpack.c.l.b16 %v1063
  %v1076 = vunpack.c.l.b16 %v1064
  %v1077 = vunpack.c.l.b16 %v1065
  %v1078 = vpack.c.b16 %v1075, %v1074
  %v1079 = vpack.c.b16 %v1077, %v1076
  %v1081 = vsel %vm255, %v1069, 0
  %v1084 = vsel %vm255, %v1078, 0
  %v1087 = vsel %vm255, %v1079, 0
  %1089 = vmatprep.subr.bf16.mxu0 0
  %1090 = vmatpush1.bf16.xpose.msra.mxu0 0
  %1091 = vmatprep.subr.bf16.mxu0 0
  %1092 = vmatpush1.bf16.xpose.msra.mxu0 0
  %1093 = vmatprep.subr.bf16.mxu0 0
  %1094 = vmatpush1.bf16.xpose.msra.mxu0 0
  %1095 = vmatprep.subr.bf16.mxu0 0
  %1096 = vmatpush1.bf16.xpose.msra.mxu0 0
  %1097 = vmatprep.subr.bf16.mxu0 0
  %1098 = vmatpush1.bf16.xpose.msra.mxu0 0
  %1099 = vmatprep.subr.bf16.mxu0 0
  %1100 = vmatpush1.bf16.xpose.msra.mxu0 0
  %1101 = vmatprep.subr.bf16.mxu0 0
  %1102 = vmatpush1.bf16.xpose.msra.mxu0 %v1087
  %1103 = vmatprep.subr.bf16.mxu0 0
  %1104 = vmatpush1.bf16.xpose.msra.mxu0 %v1084
  %1105 = vmatprep.subr.bf16.mxu0 0
  %1106 = vmatpush2.bf16.xpose.msra.mxu0 0
  %1107 = vmatprep.subr.bf16.mxu0 0
  %1108 = vmatpush2.bf16.xpose.msra.mxu0 0
  %1109 = vmatprep.subr.bf16.mxu0 0
  %1110 = vmatpush2.bf16.xpose.msra.mxu0 0
  %1111 = vmatprep.subr.bf16.mxu0 0
  %1112 = vmatpush2.bf16.xpose.msra.mxu0 0
  %1113 = vmatprep.subr.bf16.mxu0 0
  %1114 = vmatpush2.bf16.xpose.msra.mxu0 0
  %1115 = vmatprep.subr.bf16.mxu0 0
  %1116 = vmatpush2.bf16.xpose.msra.mxu0 0
  %1117 = vmatprep.subr.bf16.mxu0 0
  %1118 = vmatpush2.bf16.xpose.msra.mxu0 0
  %1119 = vmatprep.subr.bf16.mxu0 0
  %1120 = vmatpush2.bf16.xpose.msra.mxu0 0
  %1121 = vmatprep.mubr.bf16.mxu0 0
  %1122 = vmatmul.mubr.bf16.gmra.mxu0 %v1081
  %v1123 = vpop.f32.mrf.mxu0
  %v1124 = vadd.f32 0.0, %v1123
  %v1125 = vpop.f32.mrf.mxu0
  %v1126 = vpop.f32.mrf.mxu0
  %v1127 = vpop.f32.mrf.mxu0
  %1128 = vdwg.mxu0
  %v1129 = vadd.f32 %v1060, %v1124
  %s1130 = scalar_lea.vmem [#allocation2], 208
  %v1131 = vld [vmem:[%s1130] sm:$0xf]
  %v1132 = vld [vmem:[%s1130 + $0x4] sm:$0xf]
  %v1133 = vld [vmem:[%s1130 + $0x8] sm:$0xf]
  %v1134 = vld [vmem:[%s1130 + $0xc] sm:$0xf]
  %v1135 = vrot.slane %v790, 5
  %v1136 = vrot.slane %v791, 4
  %v1137 = vsel %vm242, %v1136, %v1135
  %v1138 = vpack.c.b16 %v1137, %v1137
  %v1143 = vunpack.c.l.b16 %v1131
  %v1144 = vunpack.c.l.b16 %v1132
  %v1145 = vunpack.c.l.b16 %v1133
  %v1146 = vunpack.c.l.b16 %v1134
  %v1147 = vpack.c.b16 %v1144, %v1143
  %v1148 = vpack.c.b16 %v1146, %v1145
  %v1150 = vsel %vm255, %v1138, 0
  %v1153 = vsel %vm255, %v1147, 0
  %v1156 = vsel %vm255, %v1148, 0
  %1158 = vmatprep.subr.bf16.mxu0 0
  %1159 = vmatpush1.bf16.xpose.msra.mxu0 0
  %1160 = vmatprep.subr.bf16.mxu0 0
  %1161 = vmatpush1.bf16.xpose.msra.mxu0 0
  %1162 = vmatprep.subr.bf16.mxu0 0
  %1163 = vmatpush1.bf16.xpose.msra.mxu0 0
  %1164 = vmatprep.subr.bf16.mxu0 0
  %1165 = vmatpush1.bf16.xpose.msra.mxu0 0
  %1166 = vmatprep.subr.bf16.mxu0 0
  %1167 = vmatpush1.bf16.xpose.msra.mxu0 0
  %1168 = vmatprep.subr.bf16.mxu0 0
  %1169 = vmatpush1.bf16.xpose.msra.mxu0 0
  %1170 = vmatprep.subr.bf16.mxu0 0
  %1171 = vmatpush1.bf16.xpose.msra.mxu0 %v1156
  %1172 = vmatprep.subr.bf16.mxu0 0
  %1173 = vmatpush1.bf16.xpose.msra.mxu0 %v1153
  %1174 = vmatprep.subr.bf16.mxu0 0
  %1175 = vmatpush2.bf16.xpose.msra.mxu0 0
  %1176 = vmatprep.subr.bf16.mxu0 0
  %1177 = vmatpush2.bf16.xpose.msra.mxu0 0
  %1178 = vmatprep.subr.bf16.mxu0 0
  %1179 = vmatpush2.bf16.xpose.msra.mxu0 0
  %1180 = vmatprep.subr.bf16.mxu0 0
  %1181 = vmatpush2.bf16.xpose.msra.mxu0 0
  %1182 = vmatprep.subr.bf16.mxu0 0
  %1183 = vmatpush2.bf16.xpose.msra.mxu0 0
  %1184 = vmatprep.subr.bf16.mxu0 0
  %1185 = vmatpush2.bf16.xpose.msra.mxu0 0
  %1186 = vmatprep.subr.bf16.mxu0 0
  %1187 = vmatpush2.bf16.xpose.msra.mxu0 0
  %1188 = vmatprep.subr.bf16.mxu0 0
  %1189 = vmatpush2.bf16.xpose.msra.mxu0 0
  %1190 = vmatprep.mubr.bf16.mxu0 0
  %1191 = vmatmul.mubr.bf16.gmra.mxu0 %v1150
  %v1192 = vpop.f32.mrf.mxu0
  %v1193 = vadd.f32 0.0, %v1192
  %v1194 = vpop.f32.mrf.mxu0
  %v1195 = vpop.f32.mrf.mxu0
  %v1196 = vpop.f32.mrf.mxu0
  %1197 = vdwg.mxu0
  %v1198 = vadd.f32 %v1129, %v1193
  %s1199 = scalar_lea.vmem [#allocation2], 224
  %v1200 = vld [vmem:[%s1199] sm:$0xf]
  %v1201 = vld [vmem:[%s1199 + $0x4] sm:$0xf]
  %v1202 = vld [vmem:[%s1199 + $0x8] sm:$0xf]
  %v1203 = vld [vmem:[%s1199 + $0xc] sm:$0xf]
  %v1204 = vrot.slane %v790, 6
  %v1205 = vrot.slane %v791, 5
  %v1206 = vsel %vm242, %v1205, %v1204
  %v1207 = vpack.c.b16 %v1206, %v1206
  %v1212 = vunpack.c.l.b16 %v1200
  %v1213 = vunpack.c.l.b16 %v1201
  %v1214 = vunpack.c.l.b16 %v1202
  %v1215 = vunpack.c.l.b16 %v1203
  %v1216 = vpack.c.b16 %v1213, %v1212
  %v1217 = vpack.c.b16 %v1215, %v1214
  %v1219 = vsel %vm255, %v1207, 0
  %v1222 = vsel %vm255, %v1216, 0
  %v1225 = vsel %vm255, %v1217, 0
  %1227 = vmatprep.subr.bf16.mxu0 0
  %1228 = vmatpush1.bf16.xpose.msra.mxu0 0
  %1229 = vmatprep.subr.bf16.mxu0 0
  %1230 = vmatpush1.bf16.xpose.msra.mxu0 0
  %1231 = vmatprep.subr.bf16.mxu0 0
  %1232 = vmatpush1.bf16.xpose.msra.mxu0 0
  %1233 = vmatprep.subr.bf16.mxu0 0
  %1234 = vmatpush1.bf16.xpose.msra.mxu0 0
  %1235 = vmatprep.subr.bf16.mxu0 0
  %1236 = vmatpush1.bf16.xpose.msra.mxu0 0
  %1237 = vmatprep.subr.bf16.mxu0 0
  %1238 = vmatpush1.bf16.xpose.msra.mxu0 0
  %1239 = vmatprep.subr.bf16.mxu0 0
  %1240 = vmatpush1.bf16.xpose.msra.mxu0 %v1225
  %1241 = vmatprep.subr.bf16.mxu0 0
  %1242 = vmatpush1.bf16.xpose.msra.mxu0 %v1222
  %1243 = vmatprep.subr.bf16.mxu0 0
  %1244 = vmatpush2.bf16.xpose.msra.mxu0 0
  %1245 = vmatprep.subr.bf16.mxu0 0
  %1246 = vmatpush2.bf16.xpose.msra.mxu0 0
  %1247 = vmatprep.subr.bf16.mxu0 0
  %1248 = vmatpush2.bf16.xpose.msra.mxu0 0
  %1249 = vmatprep.subr.bf16.mxu0 0
  %1250 = vmatpush2.bf16.xpose.msra.mxu0 0
  %1251 = vmatprep.subr.bf16.mxu0 0
  %1252 = vmatpush2.bf16.xpose.msra.mxu0 0
  %1253 = vmatprep.subr.bf16.mxu0 0
  %1254 = vmatpush2.bf16.xpose.msra.mxu0 0
  %1255 = vmatprep.subr.bf16.mxu0 0
  %1256 = vmatpush2.bf16.xpose.msra.mxu0 0
  %1257 = vmatprep.subr.bf16.mxu0 0
  %1258 = vmatpush2.bf16.xpose.msra.mxu0 0
  %1259 = vmatprep.mubr.bf16.mxu0 0
  %1260 = vmatmul.mubr.bf16.gmra.mxu0 %v1219
  %v1261 = vpop.f32.mrf.mxu0
  %v1262 = vadd.f32 0.0, %v1261
  %v1263 = vpop.f32.mrf.mxu0
  %v1264 = vpop.f32.mrf.mxu0
  %v1265 = vpop.f32.mrf.mxu0
  %1266 = vdwg.mxu0
  %v1267 = vadd.f32 %v1198, %v1262
  %s1268 = scalar_lea.vmem [#allocation2], 240
  %v1269 = vld [vmem:[%s1268] sm:$0xf]
  %v1270 = vld [vmem:[%s1268 + $0x4] sm:$0xf]
  %v1271 = vld [vmem:[%s1268 + $0x8] sm:$0xf]
  %v1272 = vld [vmem:[%s1268 + $0xc] sm:$0xf]
  %v1273 = vrot.slane %v790, 7
  %v1274 = vrot.slane %v791, 6
  %v1275 = vsel %vm242, %v1274, %v1273
  %v1276 = vpack.c.b16 %v1275, %v1275
  %v1281 = vunpack.c.l.b16 %v1269
  %v1282 = vunpack.c.l.b16 %v1270
  %v1283 = vunpack.c.l.b16 %v1271
  %v1284 = vunpack.c.l.b16 %v1272
  %v1285 = vpack.c.b16 %v1282, %v1281
  %v1286 = vpack.c.b16 %v1284, %v1283
  %v1288 = vsel %vm255, %v1276, 0
  %v1291 = vsel %vm255, %v1285, 0
  %v1294 = vsel %vm255, %v1286, 0
  %1296 = vmatprep.subr.bf16.mxu0 0
  %1297 = vmatpush1.bf16.xpose.msra.mxu0 0
  %1298 = vmatprep.subr.bf16.mxu0 0
  %1299 = vmatpush1.bf16.xpose.msra.mxu0 0
  %1300 = vmatprep.subr.bf16.mxu0 0
  %1301 = vmatpush1.bf16.xpose.msra.mxu0 0
  %1302 = vmatprep.subr.bf16.mxu0 0
  %1303 = vmatpush1.bf16.xpose.msra.mxu0 0
  %1304 = vmatprep.subr.bf16.mxu0 0
  %1305 = vmatpush1.bf16.xpose.msra.mxu0 0
  %1306 = vmatprep.subr.bf16.mxu0 0
  %1307 = vmatpush1.bf16.xpose.msra.mxu0 0
  %1308 = vmatprep.subr.bf16.mxu0 0
  %1309 = vmatpush1.bf16.xpose.msra.mxu0 %v1294
  %1310 = vmatprep.subr.bf16.mxu0 0
  %1311 = vmatpush1.bf16.xpose.msra.mxu0 %v1291
  %1312 = vmatprep.subr.bf16.mxu0 0
  %1313 = vmatpush2.bf16.xpose.msra.mxu0 0
  %1314 = vmatprep.subr.bf16.mxu0 0
  %1315 = vmatpush2.bf16.xpose.msra.mxu0 0
  %1316 = vmatprep.subr.bf16.mxu0 0
  %1317 = vmatpush2.bf16.xpose.msra.mxu0 0
  %1318 = vmatprep.subr.bf16.mxu0 0
  %1319 = vmatpush2.bf16.xpose.msra.mxu0 0
  %1320 = vmatprep.subr.bf16.mxu0 0
  %1321 = vmatpush2.bf16.xpose.msra.mxu0 0
  %1322 = vmatprep.subr.bf16.mxu0 0
  %1323 = vmatpush2.bf16.xpose.msra.mxu0 0
  %1324 = vmatprep.subr.bf16.mxu0 0
  %1325 = vmatpush2.bf16.xpose.msra.mxu0 0
  %1326 = vmatprep.subr.bf16.mxu0 0
  %1327 = vmatpush2.bf16.xpose.msra.mxu0 0
  %1328 = vmatprep.mubr.bf16.mxu0 0
  %1329 = vmatmul.mubr.bf16.gmra.mxu0 %v1288
  %v1330 = vpop.f32.mrf.mxu0
  %v1331 = vadd.f32 0.0, %v1330
  %v1332 = vpop.f32.mrf.mxu0
  %v1333 = vpop.f32.mrf.mxu0
  %v1334 = vpop.f32.mrf.mxu0
  %1335 = vdwg.mxu0
  %v1336 = vadd.f32 %v1267, %v1331
  %v1337 = vpack.c.bf16 %v215, %v215
  %v1338 = vpack.c.bf16 %v219, %v219
  %s1339 = scalar_lea.vmem [#allocation2], 256
  %v1340 = vld [vmem:[%s1339] sm:$0xf]
  %v1341 = vld [vmem:[%s1339 + $0x4] sm:$0xf]
  %v1342 = vld [vmem:[%s1339 + $0x8] sm:$0xf]
  %v1343 = vld [vmem:[%s1339 + $0xc] sm:$0xf]
  %v1346 = vunpack.c.l.b16 %v1337
  %v1347 = vunpack.c.l.b16 %v1338
  %v1348 = vrot.slane %v1347, 7
  %v1349 = vsel %vm242, %v1348, %v1346
  %v1350 = vpack.c.b16 %v1349, %v1349
  %v1355 = vunpack.c.l.b16 %v1340
  %v1356 = vunpack.c.l.b16 %v1341
  %v1357 = vunpack.c.l.b16 %v1342
  %v1358 = vunpack.c.l.b16 %v1343
  %v1359 = vpack.c.b16 %v1356, %v1355
  %v1360 = vpack.c.b16 %v1358, %v1357
  %v1362 = vsel %vm255, %v1350, 0
  %v1365 = vsel %vm255, %v1359, 0
  %v1368 = vsel %vm255, %v1360, 0
  %1370 = vmatprep.subr.bf16.mxu0 0
  %1371 = vmatpush1.bf16.xpose.msra.mxu0 0
  %1372 = vmatprep.subr.bf16.mxu0 0
  %1373 = vmatpush1.bf16.xpose.msra.mxu0 0
  %1374 = vmatprep.subr.bf16.mxu0 0
  %1375 = vmatpush1.bf16.xpose.msra.mxu0 0
  %1376 = vmatprep.subr.bf16.mxu0 0
  %1377 = vmatpush1.bf16.xpose.msra.mxu0 0
  %1378 = vmatprep.subr.bf16.mxu0 0
  %1379 = vmatpush1.bf16.xpose.msra.mxu0 0
  %1380 = vmatprep.subr.bf16.mxu0 0
  %1381 = vmatpush1.bf16.xpose.msra.mxu0 0
  %1382 = vmatprep.subr.bf16.mxu0 0
  %1383 = vmatpush1.bf16.xpose.msra.mxu0 %v1368
  %1384 = vmatprep.subr.bf16.mxu0 0
  %1385 = vmatpush1.bf16.xpose.msra.mxu0 %v1365
  %1386 = vmatprep.subr.bf16.mxu0 0
  %1387 = vmatpush2.bf16.xpose.msra.mxu0 0
  %1388 = vmatprep.subr.bf16.mxu0 0
  %1389 = vmatpush2.bf16.xpose.msra.mxu0 0
  %1390 = vmatprep.subr.bf16.mxu0 0
  %1391 = vmatpush2.bf16.xpose.msra.mxu0 0
  %1392 = vmatprep.subr.bf16.mxu0 0
  %1393 = vmatpush2.bf16.xpose.msra.mxu0 0
  %1394 = vmatprep.subr.bf16.mxu0 0
  %1395 = vmatpush2.bf16.xpose.msra.mxu0 0
  %1396 = vmatprep.subr.bf16.mxu0 0
  %1397 = vmatpush2.bf16.xpose.msra.mxu0 0
  %1398 = vmatprep.subr.bf16.mxu0 0
  %1399 = vmatpush2.bf16.xpose.msra.mxu0 0
  %1400 = vmatprep.subr.bf16.mxu0 0
  %1401 = vmatpush2.bf16.xpose.msra.mxu0 0
  %1402 = vmatprep.mubr.bf16.mxu0 0
  %1403 = vmatmul.mubr.bf16.gmra.mxu0 %v1362
  %v1404 = vpop.f32.mrf.mxu0
  %v1405 = vadd.f32 0.0, %v1404
  %v1406 = vpop.f32.mrf.mxu0
  %v1407 = vpop.f32.mrf.mxu0
  %v1408 = vpop.f32.mrf.mxu0
  %1409 = vdwg.mxu0
  %v1410 = vadd.f32 %v1336, %v1405
  %s1411 = scalar_lea.vmem [#allocation2], 272
  %v1412 = vld [vmem:[%s1411] sm:$0xf]
  %v1413 = vld [vmem:[%s1411 + $0x4] sm:$0xf]
  %v1414 = vld [vmem:[%s1411 + $0x8] sm:$0xf]
  %v1415 = vld [vmem:[%s1411 + $0xc] sm:$0xf]
  %v1416 = vrot.slane %v1346, 1
  %v1417 = vsel %vm242, %v1347, %v1416
  %v1418 = vpack.c.b16 %v1417, %v1417
  %v1423 = vunpack.c.l.b16 %v1412
  %v1424 = vunpack.c.l.b16 %v1413
  %v1425 = vunpack.c.l.b16 %v1414
  %v1426 = vunpack.c.l.b16 %v1415
  %v1427 = vpack.c.b16 %v1424, %v1423
  %v1428 = vpack.c.b16 %v1426, %v1425
  %v1430 = vsel %vm255, %v1418, 0
  %v1433 = vsel %vm255, %v1427, 0
  %v1436 = vsel %vm255, %v1428, 0
  %1438 = vmatprep.subr.bf16.mxu0 0
  %1439 = vmatpush1.bf16.xpose.msra.mxu0 0
  %1440 = vmatprep.subr.bf16.mxu0 0
  %1441 = vmatpush1.bf16.xpose.msra.mxu0 0
  %1442 = vmatprep.subr.bf16.mxu0 0
  %1443 = vmatpush1.bf16.xpose.msra.mxu0 0
  %1444 = vmatprep.subr.bf16.mxu0 0
  %1445 = vmatpush1.bf16.xpose.msra.mxu0 0
  %1446 = vmatprep.subr.bf16.mxu0 0
  %1447 = vmatpush1.bf16.xpose.msra.mxu0 0
  %1448 = vmatprep.subr.bf16.mxu0 0
  %1449 = vmatpush1.bf16.xpose.msra.mxu0 0
  %1450 = vmatprep.subr.bf16.mxu0 0
  %1451 = vmatpush1.bf16.xpose.msra.mxu0 %v1436
  %1452 = vmatprep.subr.bf16.mxu0 0
  %1453 = vmatpush1.bf16.xpose.msra.mxu0 %v1433
  %1454 = vmatprep.subr.bf16.mxu0 0
  %1455 = vmatpush2.bf16.xpose.msra.mxu0 0
  %1456 = vmatprep.subr.bf16.mxu0 0
  %1457 = vmatpush2.bf16.xpose.msra.mxu0 0
  %1458 = vmatprep.subr.bf16.mxu0 0
  %1459 = vmatpush2.bf16.xpose.msra.mxu0 0
  %1460 = vmatprep.subr.bf16.mxu0 0
  %1461 = vmatpush2.bf16.xpose.msra.mxu0 0
  %1462 = vmatprep.subr.bf16.mxu0 0
  %1463 = vmatpush2.bf16.xpose.msra.mxu0 0
  %1464 = vmatprep.subr.bf16.mxu0 0
  %1465 = vmatpush2.bf16.xpose.msra.mxu0 0
  %1466 = vmatprep.subr.bf16.mxu0 0
  %1467 = vmatpush2.bf16.xpose.msra.mxu0 0
  %1468 = vmatprep.subr.bf16.mxu0 0
  %1469 = vmatpush2.bf16.xpose.msra.mxu0 0
  %1470 = vmatprep.mubr.bf16.mxu0 0
  %1471 = vmatmul.mubr.bf16.gmra.mxu0 %v1430
  %v1472 = vpop.f32.mrf.mxu0
  %v1473 = vadd.f32 0.0, %v1472
  %v1474 = vpop.f32.mrf.mxu0
  %v1475 = vpop.f32.mrf.mxu0
  %v1476 = vpop.f32.mrf.mxu0
  %1477 = vdwg.mxu0
  %v1478 = vadd.f32 %v1410, %v1473
  %s1479 = scalar_lea.vmem [#allocation2], 288
  %v1480 = vld [vmem:[%s1479] sm:$0xf]
  %v1481 = vld [vmem:[%s1479 + $0x4] sm:$0xf]
  %v1482 = vld [vmem:[%s1479 + $0x8] sm:$0xf]
  %v1483 = vld [vmem:[%s1479 + $0xc] sm:$0xf]
  %v1484 = vrot.slane %v1346, 2
  %v1485 = vrot.slane %v1347, 1
  %v1486 = vsel %vm242, %v1485, %v1484
  %v1487 = vpack.c.b16 %v1486, %v1486
  %v1492 = vunpack.c.l.b16 %v1480
  %v1493 = vunpack.c.l.b16 %v1481
  %v1494 = vunpack.c.l.b16 %v1482
  %v1495 = vunpack.c.l.b16 %v1483
  %v1496 = vpack.c.b16 %v1493, %v1492
  %v1497 = vpack.c.b16 %v1495, %v1494
  %v1499 = vsel %vm255, %v1487, 0
  %v1502 = vsel %vm255, %v1496, 0
  %v1505 = vsel %vm255, %v1497, 0
  %1507 = vmatprep.subr.bf16.mxu0 0
  %1508 = vmatpush1.bf16.xpose.msra.mxu0 0
  %1509 = vmatprep.subr.bf16.mxu0 0
  %1510 = vmatpush1.bf16.xpose.msra.mxu0 0
  %1511 = vmatprep.subr.bf16.mxu0 0
  %1512 = vmatpush1.bf16.xpose.msra.mxu0 0
  %1513 = vmatprep.subr.bf16.mxu0 0
  %1514 = vmatpush1.bf16.xpose.msra.mxu0 0
  %1515 = vmatprep.subr.bf16.mxu0 0
  %1516 = vmatpush1.bf16.xpose.msra.mxu0 0
  %1517 = vmatprep.subr.bf16.mxu0 0
  %1518 = vmatpush1.bf16.xpose.msra.mxu0 0
  %1519 = vmatprep.subr.bf16.mxu0 0
  %1520 = vmatpush1.bf16.xpose.msra.mxu0 %v1505
  %1521 = vmatprep.subr.bf16.mxu0 0
  %1522 = vmatpush1.bf16.xpose.msra.mxu0 %v1502
  %1523 = vmatprep.subr.bf16.mxu0 0
  %1524 = vmatpush2.bf16.xpose.msra.mxu0 0
  %1525 = vmatprep.subr.bf16.mxu0 0
  %1526 = vmatpush2.bf16.xpose.msra.mxu0 0
  %1527 = vmatprep.subr.bf16.mxu0 0
  %1528 = vmatpush2.bf16.xpose.msra.mxu0 0
  %1529 = vmatprep.subr.bf16.mxu0 0
  %1530 = vmatpush2.bf16.xpose.msra.mxu0 0
  %1531 = vmatprep.subr.bf16.mxu0 0
  %1532 = vmatpush2.bf16.xpose.msra.mxu0 0
  %1533 = vmatprep.subr.bf16.mxu0 0
  %1534 = vmatpush2.bf16.xpose.msra.mxu0 0
  %1535 = vmatprep.subr.bf16.mxu0 0
  %1536 = vmatpush2.bf16.xpose.msra.mxu0 0
  %1537 = vmatprep.subr.bf16.mxu0 0
  %1538 = vmatpush2.bf16.xpose.msra.mxu0 0
  %1539 = vmatprep.mubr.bf16.mxu0 0
  %1540 = vmatmul.mubr.bf16.gmra.mxu0 %v1499
  %v1541 = vpop.f32.mrf.mxu0
  %v1542 = vadd.f32 0.0, %v1541
  %v1543 = vpop.f32.mrf.mxu0
  %v1544 = vpop.f32.mrf.mxu0
  %v1545 = vpop.f32.mrf.mxu0
  %1546 = vdwg.mxu0
  %v1547 = vadd.f32 %v1478, %v1542
  %s1548 = scalar_lea.vmem [#allocation2], 304
  %v1549 = vld [vmem:[%s1548] sm:$0xf]
  %v1550 = vld [vmem:[%s1548 + $0x4] sm:$0xf]
  %v1551 = vld [vmem:[%s1548 + $0x8] sm:$0xf]
  %v1552 = vld [vmem:[%s1548 + $0xc] sm:$0xf]
  %v1553 = vrot.slane %v1346, 3
  %v1554 = vrot.slane %v1347, 2
  %v1555 = vsel %vm242, %v1554, %v1553
  %v1556 = vpack.c.b16 %v1555, %v1555
  %v1561 = vunpack.c.l.b16 %v1549
  %v1562 = vunpack.c.l.b16 %v1550
  %v1563 = vunpack.c.l.b16 %v1551
  %v1564 = vunpack.c.l.b16 %v1552
  %v1565 = vpack.c.b16 %v1562, %v1561
  %v1566 = vpack.c.b16 %v1564, %v1563
  %v1568 = vsel %vm255, %v1556, 0
  %v1571 = vsel %vm255, %v1565, 0
  %v1574 = vsel %vm255, %v1566, 0
  %1576 = vmatprep.subr.bf16.mxu0 0
  %1577 = vmatpush1.bf16.xpose.msra.mxu0 0
  %1578 = vmatprep.subr.bf16.mxu0 0
  %1579 = vmatpush1.bf16.xpose.msra.mxu0 0
  %1580 = vmatprep.subr.bf16.mxu0 0
  %1581 = vmatpush1.bf16.xpose.msra.mxu0 0
  %1582 = vmatprep.subr.bf16.mxu0 0
  %1583 = vmatpush1.bf16.xpose.msra.mxu0 0
  %1584 = vmatprep.subr.bf16.mxu0 0
  %1585 = vmatpush1.bf16.xpose.msra.mxu0 0
  %1586 = vmatprep.subr.bf16.mxu0 0
  %1587 = vmatpush1.bf16.xpose.msra.mxu0 0
  %1588 = vmatprep.subr.bf16.mxu0 0
  %1589 = vmatpush1.bf16.xpose.msra.mxu0 %v1574
  %1590 = vmatprep.subr.bf16.mxu0 0
  %1591 = vmatpush1.bf16.xpose.msra.mxu0 %v1571
  %1592 = vmatprep.subr.bf16.mxu0 0
  %1593 = vmatpush2.bf16.xpose.msra.mxu0 0
  %1594 = vmatprep.subr.bf16.mxu0 0
  %1595 = vmatpush2.bf16.xpose.msra.mxu0 0
  %1596 = vmatprep.subr.bf16.mxu0 0
  %1597 = vmatpush2.bf16.xpose.msra.mxu0 0
  %1598 = vmatprep.subr.bf16.mxu0 0
  %1599 = vmatpush2.bf16.xpose.msra.mxu0 0
  %1600 = vmatprep.subr.bf16.mxu0 0
  %1601 = vmatpush2.bf16.xpose.msra.mxu0 0
  %1602 = vmatprep.subr.bf16.mxu0 0
  %1603 = vmatpush2.bf16.xpose.msra.mxu0 0
  %1604 = vmatprep.subr.bf16.mxu0 0
  %1605 = vmatpush2.bf16.xpose.msra.mxu0 0
  %1606 = vmatprep.subr.bf16.mxu0 0
  %1607 = vmatpush2.bf16.xpose.msra.mxu0 0
  %1608 = vmatprep.mubr.bf16.mxu0 0
  %1609 = vmatmul.mubr.bf16.gmra.mxu0 %v1568
  %v1610 = vpop.f32.mrf.mxu0
  %v1611 = vadd.f32 0.0, %v1610
  %v1612 = vpop.f32.mrf.mxu0
  %v1613 = vpop.f32.mrf.mxu0
  %v1614 = vpop.f32.mrf.mxu0
  %1615 = vdwg.mxu0
  %v1616 = vadd.f32 %v1547, %v1611
  %s1617 = scalar_lea.vmem [#allocation2], 320
  %v1618 = vld [vmem:[%s1617] sm:$0xf]
  %v1619 = vld [vmem:[%s1617 + $0x4] sm:$0xf]
  %v1620 = vld [vmem:[%s1617 + $0x8] sm:$0xf]
  %v1621 = vld [vmem:[%s1617 + $0xc] sm:$0xf]
  %v1622 = vrot.slane %v1346, 4
  %v1623 = vrot.slane %v1347, 3
  %v1624 = vsel %vm242, %v1623, %v1622
  %v1625 = vpack.c.b16 %v1624, %v1624
  %v1630 = vunpack.c.l.b16 %v1618
  %v1631 = vunpack.c.l.b16 %v1619
  %v1632 = vunpack.c.l.b16 %v1620
  %v1633 = vunpack.c.l.b16 %v1621
  %v1634 = vpack.c.b16 %v1631, %v1630
  %v1635 = vpack.c.b16 %v1633, %v1632
  %v1637 = vsel %vm255, %v1625, 0
  %v1640 = vsel %vm255, %v1634, 0
  %v1643 = vsel %vm255, %v1635, 0
  %1645 = vmatprep.subr.bf16.mxu0 0
  %1646 = vmatpush1.bf16.xpose.msra.mxu0 0
  %1647 = vmatprep.subr.bf16.mxu0 0
  %1648 = vmatpush1.bf16.xpose.msra.mxu0 0
  %1649 = vmatprep.subr.bf16.mxu0 0
  %1650 = vmatpush1.bf16.xpose.msra.mxu0 0
  %1651 = vmatprep.subr.bf16.mxu0 0
  %1652 = vmatpush1.bf16.xpose.msra.mxu0 0
  %1653 = vmatprep.subr.bf16.mxu0 0
  %1654 = vmatpush1.bf16.xpose.msra.mxu0 0
  %1655 = vmatprep.subr.bf16.mxu0 0
  %1656 = vmatpush1.bf16.xpose.msra.mxu0 0
  %1657 = vmatprep.subr.bf16.mxu0 0
  %1658 = vmatpush1.bf16.xpose.msra.mxu0 %v1643
  %1659 = vmatprep.subr.bf16.mxu0 0
  %1660 = vmatpush1.bf16.xpose.msra.mxu0 %v1640
  %1661 = vmatprep.subr.bf16.mxu0 0
  %1662 = vmatpush2.bf16.xpose.msra.mxu0 0
  %1663 = vmatprep.subr.bf16.mxu0 0
  %1664 = vmatpush2.bf16.xpose.msra.mxu0 0
  %1665 = vmatprep.subr.bf16.mxu0 0
  %1666 = vmatpush2.bf16.xpose.msra.mxu0 0
  %1667 = vmatprep.subr.bf16.mxu0 0
  %1668 = vmatpush2.bf16.xpose.msra.mxu0 0
  %1669 = vmatprep.subr.bf16.mxu0 0
  %1670 = vmatpush2.bf16.xpose.msra.mxu0 0
  %1671 = vmatprep.subr.bf16.mxu0 0
  %1672 = vmatpush2.bf16.xpose.msra.mxu0 0
  %1673 = vmatprep.subr.bf16.mxu0 0
  %1674 = vmatpush2.bf16.xpose.msra.mxu0 0
  %1675 = vmatprep.subr.bf16.mxu0 0
  %1676 = vmatpush2.bf16.xpose.msra.mxu0 0
  %1677 = vmatprep.mubr.bf16.mxu0 0
  %1678 = vmatmul.mubr.bf16.gmra.mxu0 %v1637
  %v1679 = vpop.f32.mrf.mxu0
  %v1680 = vadd.f32 0.0, %v1679
  %v1681 = vpop.f32.mrf.mxu0
  %v1682 = vpop.f32.mrf.mxu0
  %v1683 = vpop.f32.mrf.mxu0
  %1684 = vdwg.mxu0
  %v1685 = vadd.f32 %v1616, %v1680
  %s1686 = scalar_lea.vmem [#allocation2], 336
  %v1687 = vld [vmem:[%s1686] sm:$0xf]
  %v1688 = vld [vmem:[%s1686 + $0x4] sm:$0xf]
  %v1689 = vld [vmem:[%s1686 + $0x8] sm:$0xf]
  %v1690 = vld [vmem:[%s1686 + $0xc] sm:$0xf]
  %v1691 = vrot.slane %v1346, 5
  %v1692 = vrot.slane %v1347, 4
  %v1693 = vsel %vm242, %v1692, %v1691
  %v1694 = vpack.c.b16 %v1693, %v1693
  %v1699 = vunpack.c.l.b16 %v1687
  %v1700 = vunpack.c.l.b16 %v1688
  %v1701 = vunpack.c.l.b16 %v1689
  %v1702 = vunpack.c.l.b16 %v1690
  %v1703 = vpack.c.b16 %v1700, %v1699
  %v1704 = vpack.c.b16 %v1702, %v1701
  %v1706 = vsel %vm255, %v1694, 0
  %v1709 = vsel %vm255, %v1703, 0
  %v1712 = vsel %vm255, %v1704, 0
  %1714 = vmatprep.subr.bf16.mxu0 0
  %1715 = vmatpush1.bf16.xpose.msra.mxu0 0
  %1716 = vmatprep.subr.bf16.mxu0 0
  %1717 = vmatpush1.bf16.xpose.msra.mxu0 0
  %1718 = vmatprep.subr.bf16.mxu0 0
  %1719 = vmatpush1.bf16.xpose.msra.mxu0 0
  %1720 = vmatprep.subr.bf16.mxu0 0
  %1721 = vmatpush1.bf16.xpose.msra.mxu0 0
  %1722 = vmatprep.subr.bf16.mxu0 0
  %1723 = vmatpush1.bf16.xpose.msra.mxu0 0
  %1724 = vmatprep.subr.bf16.mxu0 0
  %1725 = vmatpush1.bf16.xpose.msra.mxu0 0
  %1726 = vmatprep.subr.bf16.mxu0 0
  %1727 = vmatpush1.bf16.xpose.msra.mxu0 %v1712
  %1728 = vmatprep.subr.bf16.mxu0 0
  %1729 = vmatpush1.bf16.xpose.msra.mxu0 %v1709
  %1730 = vmatprep.subr.bf16.mxu0 0
  %1731 = vmatpush2.bf16.xpose.msra.mxu0 0
  %1732 = vmatprep.subr.bf16.mxu0 0
  %1733 = vmatpush2.bf16.xpose.msra.mxu0 0
  %1734 = vmatprep.subr.bf16.mxu0 0
  %1735 = vmatpush2.bf16.xpose.msra.mxu0 0
  %1736 = vmatprep.subr.bf16.mxu0 0
  %1737 = vmatpush2.bf16.xpose.msra.mxu0 0
  %1738 = vmatprep.subr.bf16.mxu0 0
  %1739 = vmatpush2.bf16.xpose.msra.mxu0 0
  %1740 = vmatprep.subr.bf16.mxu0 0
  %1741 = vmatpush2.bf16.xpose.msra.mxu0 0
  %1742 = vmatprep.subr.bf16.mxu0 0
  %1743 = vmatpush2.bf16.xpose.msra.mxu0 0
  %1744 = vmatprep.subr.bf16.mxu0 0
  %1745 = vmatpush2.bf16.xpose.msra.mxu0 0
  %1746 = vmatprep.mubr.bf16.mxu0 0
  %1747 = vmatmul.mubr.bf16.gmra.mxu0 %v1706
  %v1748 = vpop.f32.mrf.mxu0
  %v1749 = vadd.f32 0.0, %v1748
  %v1750 = vpop.f32.mrf.mxu0
  %v1751 = vpop.f32.mrf.mxu0
  %v1752 = vpop.f32.mrf.mxu0
  %1753 = vdwg.mxu0
  %v1754 = vadd.f32 %v1685, %v1749
  %s1755 = scalar_lea.vmem [#allocation2], 352
  %v1756 = vld [vmem:[%s1755] sm:$0xf]
  %v1757 = vld [vmem:[%s1755 + $0x4] sm:$0xf]
  %v1758 = vld [vmem:[%s1755 + $0x8] sm:$0xf]
  %v1759 = vld [vmem:[%s1755 + $0xc] sm:$0xf]
  %v1760 = vrot.slane %v1346, 6
  %v1761 = vrot.slane %v1347, 5
  %v1762 = vsel %vm242, %v1761, %v1760
  %v1763 = vpack.c.b16 %v1762, %v1762
  %v1768 = vunpack.c.l.b16 %v1756
  %v1769 = vunpack.c.l.b16 %v1757
  %v1770 = vunpack.c.l.b16 %v1758
  %v1771 = vunpack.c.l.b16 %v1759
  %v1772 = vpack.c.b16 %v1769, %v1768
  %v1773 = vpack.c.b16 %v1771, %v1770
  %v1775 = vsel %vm255, %v1763, 0
  %v1778 = vsel %vm255, %v1772, 0
  %v1781 = vsel %vm255, %v1773, 0
  %1783 = vmatprep.subr.bf16.mxu0 0
  %1784 = vmatpush1.bf16.xpose.msra.mxu0 0
  %1785 = vmatprep.subr.bf16.mxu0 0
  %1786 = vmatpush1.bf16.xpose.msra.mxu0 0
  %1787 = vmatprep.subr.bf16.mxu0 0
  %1788 = vmatpush1.bf16.xpose.msra.mxu0 0
  %1789 = vmatprep.subr.bf16.mxu0 0
  %1790 = vmatpush1.bf16.xpose.msra.mxu0 0
  %1791 = vmatprep.subr.bf16.mxu0 0
  %1792 = vmatpush1.bf16.xpose.msra.mxu0 0
  %1793 = vmatprep.subr.bf16.mxu0 0
  %1794 = vmatpush1.bf16.xpose.msra.mxu0 0
  %1795 = vmatprep.subr.bf16.mxu0 0
  %1796 = vmatpush1.bf16.xpose.msra.mxu0 %v1781
  %1797 = vmatprep.subr.bf16.mxu0 0
  %1798 = vmatpush1.bf16.xpose.msra.mxu0 %v1778
  %1799 = vmatprep.subr.bf16.mxu0 0
  %1800 = vmatpush2.bf16.xpose.msra.mxu0 0
  %1801 = vmatprep.subr.bf16.mxu0 0
  %1802 = vmatpush2.bf16.xpose.msra.mxu0 0
  %1803 = vmatprep.subr.bf16.mxu0 0
  %1804 = vmatpush2.bf16.xpose.msra.mxu0 0
  %1805 = vmatprep.subr.bf16.mxu0 0
  %1806 = vmatpush2.bf16.xpose.msra.mxu0 0
  %1807 = vmatprep.subr.bf16.mxu0 0
  %1808 = vmatpush2.bf16.xpose.msra.mxu0 0
  %1809 = vmatprep.subr.bf16.mxu0 0
  %1810 = vmatpush2.bf16.xpose.msra.mxu0 0
  %1811 = vmatprep.subr.bf16.mxu0 0
  %1812 = vmatpush2.bf16.xpose.msra.mxu0 0
  %1813 = vmatprep.subr.bf16.mxu0 0
  %1814 = vmatpush2.bf16.xpose.msra.mxu0 0
  %1815 = vmatprep.mubr.bf16.mxu0 0
  %1816 = vmatmul.mubr.bf16.gmra.mxu0 %v1775
  %v1817 = vpop.f32.mrf.mxu0
  %v1818 = vadd.f32 0.0, %v1817
  %v1819 = vpop.f32.mrf.mxu0
  %v1820 = vpop.f32.mrf.mxu0
  %v1821 = vpop.f32.mrf.mxu0
  %1822 = vdwg.mxu0
  %v1823 = vadd.f32 %v1754, %v1818
  %s1824 = scalar_lea.vmem [#allocation2], 368
  %v1825 = vld [vmem:[%s1824] sm:$0xf]
  %v1826 = vld [vmem:[%s1824 + $0x4] sm:$0xf]
  %v1827 = vld [vmem:[%s1824 + $0x8] sm:$0xf]
  %v1828 = vld [vmem:[%s1824 + $0xc] sm:$0xf]
  %v1829 = vrot.slane %v1346, 7
  %v1830 = vrot.slane %v1347, 6
  %v1831 = vsel %vm242, %v1830, %v1829
  %v1832 = vpack.c.b16 %v1831, %v1831
  %v1837 = vunpack.c.l.b16 %v1825
  %v1838 = vunpack.c.l.b16 %v1826
  %v1839 = vunpack.c.l.b16 %v1827
  %v1840 = vunpack.c.l.b16 %v1828
  %v1841 = vpack.c.b16 %v1838, %v1837
  %v1842 = vpack.c.b16 %v1840, %v1839
  %v1844 = vsel %vm255, %v1832, 0
  %v1847 = vsel %vm255, %v1841, 0
  %v1850 = vsel %vm255, %v1842, 0
  %1852 = vmatprep.subr.bf16.mxu0 0
  %1853 = vmatpush1.bf16.xpose.msra.mxu0 0
  %1854 = vmatprep.subr.bf16.mxu0 0
  %1855 = vmatpush1.bf16.xpose.msra.mxu0 0
  %1856 = vmatprep.subr.bf16.mxu0 0
  %1857 = vmatpush1.bf16.xpose.msra.mxu0 0
  %1858 = vmatprep.subr.bf16.mxu0 0
  %1859 = vmatpush1.bf16.xpose.msra.mxu0 0
  %1860 = vmatprep.subr.bf16.mxu0 0
  %1861 = vmatpush1.bf16.xpose.msra.mxu0 0
  %1862 = vmatprep.subr.bf16.mxu0 0
  %1863 = vmatpush1.bf16.xpose.msra.mxu0 0
  %1864 = vmatprep.subr.bf16.mxu0 0
  %1865 = vmatpush1.bf16.xpose.msra.mxu0 %v1850
  %1866 = vmatprep.subr.bf16.mxu0 0
  %1867 = vmatpush1.bf16.xpose.msra.mxu0 %v1847
  %1868 = vmatprep.subr.bf16.mxu0 0
  %1869 = vmatpush2.bf16.xpose.msra.mxu0 0
  %1870 = vmatprep.subr.bf16.mxu0 0
  %1871 = vmatpush2.bf16.xpose.msra.mxu0 0
  %1872 = vmatprep.subr.bf16.mxu0 0
  %1873 = vmatpush2.bf16.xpose.msra.mxu0 0
  %1874 = vmatprep.subr.bf16.mxu0 0
  %1875 = vmatpush2.bf16.xpose.msra.mxu0 0
  %1876 = vmatprep.subr.bf16.mxu0 0
  %1877 = vmatpush2.bf16.xpose.msra.mxu0 0
  %1878 = vmatprep.subr.bf16.mxu0 0
  %1879 = vmatpush2.bf16.xpose.msra.mxu0 0
  %1880 = vmatprep.subr.bf16.mxu0 0
  %1881 = vmatpush2.bf16.xpose.msra.mxu0 0
  %1882 = vmatprep.subr.bf16.mxu0 0
  %1883 = vmatpush2.bf16.xpose.msra.mxu0 0
  %1884 = vmatprep.mubr.bf16.mxu0 0
  %1885 = vmatmul.mubr.bf16.gmra.mxu0 %v1844
  %v1886 = vpop.f32.mrf.mxu0
  %v1887 = vadd.f32 0.0, %v1886
  %v1888 = vpop.f32.mrf.mxu0
  %v1889 = vpop.f32.mrf.mxu0
  %v1890 = vpop.f32.mrf.mxu0
  %1891 = vdwg.mxu0
  %v1892 = vadd.f32 %v1823, %v1887
  %v1893 = vpack.c.bf16 %v216, %v216
  %v1894 = vpack.c.bf16 %v220, %v220
  %s1895 = scalar_lea.vmem [#allocation2], 384
  %v1896 = vld [vmem:[%s1895] sm:$0xf]
  %v1897 = vld [vmem:[%s1895 + $0x4] sm:$0xf]
  %v1898 = vld [vmem:[%s1895 + $0x8] sm:$0xf]
  %v1899 = vld [vmem:[%s1895 + $0xc] sm:$0xf]
  %v1902 = vunpack.c.l.b16 %v1893
  %v1903 = vunpack.c.l.b16 %v1894
  %v1904 = vrot.slane %v1903, 7
  %v1905 = vsel %vm242, %v1904, %v1902
  %v1906 = vpack.c.b16 %v1905, %v1905
  %v1911 = vunpack.c.l.b16 %v1896
  %v1912 = vunpack.c.l.b16 %v1897
  %v1913 = vunpack.c.l.b16 %v1898
  %v1914 = vunpack.c.l.b16 %v1899
  %v1915 = vpack.c.b16 %v1912, %v1911
  %v1916 = vpack.c.b16 %v1914, %v1913
  %v1918 = vsel %vm255, %v1906, 0
  %v1921 = vsel %vm255, %v1915, 0
  %v1924 = vsel %vm255, %v1916, 0
  %1926 = vmatprep.subr.bf16.mxu0 0
  %1927 = vmatpush1.bf16.xpose.msra.mxu0 0
  %1928 = vmatprep.subr.bf16.mxu0 0
  %1929 = vmatpush1.bf16.xpose.msra.mxu0 0
  %1930 = vmatprep.subr.bf16.mxu0 0
  %1931 = vmatpush1.bf16.xpose.msra.mxu0 0
  %1932 = vmatprep.subr.bf16.mxu0 0
  %1933 = vmatpush1.bf16.xpose.msra.mxu0 0
  %1934 = vmatprep.subr.bf16.mxu0 0
  %1935 = vmatpush1.bf16.xpose.msra.mxu0 0
  %1936 = vmatprep.subr.bf16.mxu0 0
  %1937 = vmatpush1.bf16.xpose.msra.mxu0 0
  %1938 = vmatprep.subr.bf16.mxu0 0
  %1939 = vmatpush1.bf16.xpose.msra.mxu0 %v1924
  %1940 = vmatprep.subr.bf16.mxu0 0
  %1941 = vmatpush1.bf16.xpose.msra.mxu0 %v1921
  %1942 = vmatprep.subr.bf16.mxu0 0
  %1943 = vmatpush2.bf16.xpose.msra.mxu0 0
  %1944 = vmatprep.subr.bf16.mxu0 0
  %1945 = vmatpush2.bf16.xpose.msra.mxu0 0
  %1946 = vmatprep.subr.bf16.mxu0 0
  %1947 = vmatpush2.bf16.xpose.msra.mxu0 0
  %1948 = vmatprep.subr.bf16.mxu0 0
  %1949 = vmatpush2.bf16.xpose.msra.mxu0 0
  %1950 = vmatprep.subr.bf16.mxu0 0
  %1951 = vmatpush2.bf16.xpose.msra.mxu0 0
  %1952 = vmatprep.subr.bf16.mxu0 0
  %1953 = vmatpush2.bf16.xpose.msra.mxu0 0
  %1954 = vmatprep.subr.bf16.mxu0 0
  %1955 = vmatpush2.bf16.xpose.msra.mxu0 0
  %1956 = vmatprep.subr.bf16.mxu0 0
  %1957 = vmatpush2.bf16.xpose.msra.mxu0 0
  %1958 = vmatprep.mubr.bf16.mxu0 0
  %1959 = vmatmul.mubr.bf16.gmra.mxu0 %v1918
  %v1960 = vpop.f32.mrf.mxu0
  %v1961 = vadd.f32 0.0, %v1960
  %v1962 = vpop.f32.mrf.mxu0
  %v1963 = vpop.f32.mrf.mxu0
  %v1964 = vpop.f32.mrf.mxu0
  %1965 = vdwg.mxu0
  %v1966 = vadd.f32 %v1892, %v1961
  %s1967 = scalar_lea.vmem [#allocation2], 400
  %v1968 = vld [vmem:[%s1967] sm:$0xf]
  %v1969 = vld [vmem:[%s1967 + $0x4] sm:$0xf]
  %v1970 = vld [vmem:[%s1967 + $0x8] sm:$0xf]
  %v1971 = vld [vmem:[%s1967 + $0xc] sm:$0xf]
  %v1972 = vrot.slane %v1902, 1
  %v1973 = vsel %vm242, %v1903, %v1972
  %v1974 = vpack.c.b16 %v1973, %v1973
  %v1979 = vunpack.c.l.b16 %v1968
  %v1980 = vunpack.c.l.b16 %v1969
  %v1981 = vunpack.c.l.b16 %v1970
  %v1982 = vunpack.c.l.b16 %v1971
  %v1983 = vpack.c.b16 %v1980, %v1979
  %v1984 = vpack.c.b16 %v1982, %v1981
  %v1986 = vsel %vm255, %v1974, 0
  %v1989 = vsel %vm255, %v1983, 0
  %v1992 = vsel %vm255, %v1984, 0
  %1994 = vmatprep.subr.bf16.mxu0 0
  %1995 = vmatpush1.bf16.xpose.msra.mxu0 0
  %1996 = vmatprep.subr.bf16.mxu0 0
  %1997 = vmatpush1.bf16.xpose.msra.mxu0 0
  %1998 = vmatprep.subr.bf16.mxu0 0
  %1999 = vmatpush1.bf16.xpose.msra.mxu0 0
  %2000 = vmatprep.subr.bf16.mxu0 0
  %2001 = vmatpush1.bf16.xpose.msra.mxu0 0
  %2002 = vmatprep.subr.bf16.mxu0 0
  %2003 = vmatpush1.bf16.xpose.msra.mxu0 0
  %2004 = vmatprep.subr.bf16.mxu0 0
  %2005 = vmatpush1.bf16.xpose.msra.mxu0 0
  %2006 = vmatprep.subr.bf16.mxu0 0
  %2007 = vmatpush1.bf16.xpose.msra.mxu0 %v1992
  %2008 = vmatprep.subr.bf16.mxu0 0
  %2009 = vmatpush1.bf16.xpose.msra.mxu0 %v1989
  %2010 = vmatprep.subr.bf16.mxu0 0
  %2011 = vmatpush2.bf16.xpose.msra.mxu0 0
  %2012 = vmatprep.subr.bf16.mxu0 0
  %2013 = vmatpush2.bf16.xpose.msra.mxu0 0
  %2014 = vmatprep.subr.bf16.mxu0 0
  %2015 = vmatpush2.bf16.xpose.msra.mxu0 0
  %2016 = vmatprep.subr.bf16.mxu0 0
  %2017 = vmatpush2.bf16.xpose.msra.mxu0 0
  %2018 = vmatprep.subr.bf16.mxu0 0
  %2019 = vmatpush2.bf16.xpose.msra.mxu0 0
  %2020 = vmatprep.subr.bf16.mxu0 0
  %2021 = vmatpush2.bf16.xpose.msra.mxu0 0
  %2022 = vmatprep.subr.bf16.mxu0 0
  %2023 = vmatpush2.bf16.xpose.msra.mxu0 0
  %2024 = vmatprep.subr.bf16.mxu0 0
  %2025 = vmatpush2.bf16.xpose.msra.mxu0 0
  %2026 = vmatprep.mubr.bf16.mxu0 0
  %2027 = vmatmul.mubr.bf16.gmra.mxu0 %v1986
  %v2028 = vpop.f32.mrf.mxu0
  %v2029 = vadd.f32 0.0, %v2028
  %v2030 = vpop.f32.mrf.mxu0
  %v2031 = vpop.f32.mrf.mxu0
  %v2032 = vpop.f32.mrf.mxu0
  %2033 = vdwg.mxu0
  %v2034 = vadd.f32 %v1966, %v2029
  %s2035 = scalar_lea.vmem [#allocation2], 416
  %v2036 = vld [vmem:[%s2035] sm:$0xf]
  %v2037 = vld [vmem:[%s2035 + $0x4] sm:$0xf]
  %v2038 = vld [vmem:[%s2035 + $0x8] sm:$0xf]
  %v2039 = vld [vmem:[%s2035 + $0xc] sm:$0xf]
  %v2040 = vrot.slane %v1902, 2
  %v2041 = vrot.slane %v1903, 1
  %v2042 = vsel %vm242, %v2041, %v2040
  %v2043 = vpack.c.b16 %v2042, %v2042
  %v2048 = vunpack.c.l.b16 %v2036
  %v2049 = vunpack.c.l.b16 %v2037
  %v2050 = vunpack.c.l.b16 %v2038
  %v2051 = vunpack.c.l.b16 %v2039
  %v2052 = vpack.c.b16 %v2049, %v2048
  %v2053 = vpack.c.b16 %v2051, %v2050
  %v2055 = vsel %vm255, %v2043, 0
  %v2058 = vsel %vm255, %v2052, 0
  %v2061 = vsel %vm255, %v2053, 0
  %2063 = vmatprep.subr.bf16.mxu0 0
  %2064 = vmatpush1.bf16.xpose.msra.mxu0 0
  %2065 = vmatprep.subr.bf16.mxu0 0
  %2066 = vmatpush1.bf16.xpose.msra.mxu0 0
  %2067 = vmatprep.subr.bf16.mxu0 0
  %2068 = vmatpush1.bf16.xpose.msra.mxu0 0
  %2069 = vmatprep.subr.bf16.mxu0 0
  %2070 = vmatpush1.bf16.xpose.msra.mxu0 0
  %2071 = vmatprep.subr.bf16.mxu0 0
  %2072 = vmatpush1.bf16.xpose.msra.mxu0 0
  %2073 = vmatprep.subr.bf16.mxu0 0
  %2074 = vmatpush1.bf16.xpose.msra.mxu0 0
  %2075 = vmatprep.subr.bf16.mxu0 0
  %2076 = vmatpush1.bf16.xpose.msra.mxu0 %v2061
  %2077 = vmatprep.subr.bf16.mxu0 0
  %2078 = vmatpush1.bf16.xpose.msra.mxu0 %v2058
  %2079 = vmatprep.subr.bf16.mxu0 0
  %2080 = vmatpush2.bf16.xpose.msra.mxu0 0
  %2081 = vmatprep.subr.bf16.mxu0 0
  %2082 = vmatpush2.bf16.xpose.msra.mxu0 0
  %2083 = vmatprep.subr.bf16.mxu0 0
  %2084 = vmatpush2.bf16.xpose.msra.mxu0 0
  %2085 = vmatprep.subr.bf16.mxu0 0
  %2086 = vmatpush2.bf16.xpose.msra.mxu0 0
  %2087 = vmatprep.subr.bf16.mxu0 0
  %2088 = vmatpush2.bf16.xpose.msra.mxu0 0
  %2089 = vmatprep.subr.bf16.mxu0 0
  %2090 = vmatpush2.bf16.xpose.msra.mxu0 0
  %2091 = vmatprep.subr.bf16.mxu0 0
  %2092 = vmatpush2.bf16.xpose.msra.mxu0 0
  %2093 = vmatprep.subr.bf16.mxu0 0
  %2094 = vmatpush2.bf16.xpose.msra.mxu0 0
  %2095 = vmatprep.mubr.bf16.mxu0 0
  %2096 = vmatmul.mubr.bf16.gmra.mxu0 %v2055
  %v2097 = vpop.f32.mrf.mxu0
  %v2098 = vadd.f32 0.0, %v2097
  %v2099 = vpop.f32.mrf.mxu0
  %v2100 = vpop.f32.mrf.mxu0
  %v2101 = vpop.f32.mrf.mxu0
  %2102 = vdwg.mxu0
  %v2103 = vadd.f32 %v2034, %v2098
  %s2104 = scalar_lea.vmem [#allocation2], 432
  %v2105 = vld [vmem:[%s2104] sm:$0xf]
  %v2106 = vld [vmem:[%s2104 + $0x4] sm:$0xf]
  %v2107 = vld [vmem:[%s2104 + $0x8] sm:$0xf]
  %v2108 = vld [vmem:[%s2104 + $0xc] sm:$0xf]
  %v2109 = vrot.slane %v1902, 3
  %v2110 = vrot.slane %v1903, 2
  %v2111 = vsel %vm242, %v2110, %v2109
  %v2112 = vpack.c.b16 %v2111, %v2111
  %v2117 = vunpack.c.l.b16 %v2105
  %v2118 = vunpack.c.l.b16 %v2106
  %v2119 = vunpack.c.l.b16 %v2107
  %v2120 = vunpack.c.l.b16 %v2108
  %v2121 = vpack.c.b16 %v2118, %v2117
  %v2122 = vpack.c.b16 %v2120, %v2119
  %v2124 = vsel %vm255, %v2112, 0
  %v2127 = vsel %vm255, %v2121, 0
  %v2130 = vsel %vm255, %v2122, 0
  %2132 = vmatprep.subr.bf16.mxu0 0
  %2133 = vmatpush1.bf16.xpose.msra.mxu0 0
  %2134 = vmatprep.subr.bf16.mxu0 0
  %2135 = vmatpush1.bf16.xpose.msra.mxu0 0
  %2136 = vmatprep.subr.bf16.mxu0 0
  %2137 = vmatpush1.bf16.xpose.msra.mxu0 0
  %2138 = vmatprep.subr.bf16.mxu0 0
  %2139 = vmatpush1.bf16.xpose.msra.mxu0 0
  %2140 = vmatprep.subr.bf16.mxu0 0
  %2141 = vmatpush1.bf16.xpose.msra.mxu0 0
  %2142 = vmatprep.subr.bf16.mxu0 0
  %2143 = vmatpush1.bf16.xpose.msra.mxu0 0
  %2144 = vmatprep.subr.bf16.mxu0 0
  %2145 = vmatpush1.bf16.xpose.msra.mxu0 %v2130
  %2146 = vmatprep.subr.bf16.mxu0 0
  %2147 = vmatpush1.bf16.xpose.msra.mxu0 %v2127
  %2148 = vmatprep.subr.bf16.mxu0 0
  %2149 = vmatpush2.bf16.xpose.msra.mxu0 0
  %2150 = vmatprep.subr.bf16.mxu0 0
  %2151 = vmatpush2.bf16.xpose.msra.mxu0 0
  %2152 = vmatprep.subr.bf16.mxu0 0
  %2153 = vmatpush2.bf16.xpose.msra.mxu0 0
  %2154 = vmatprep.subr.bf16.mxu0 0
  %2155 = vmatpush2.bf16.xpose.msra.mxu0 0
  %2156 = vmatprep.subr.bf16.mxu0 0
  %2157 = vmatpush2.bf16.xpose.msra.mxu0 0
  %2158 = vmatprep.subr.bf16.mxu0 0
  %2159 = vmatpush2.bf16.xpose.msra.mxu0 0
  %2160 = vmatprep.subr.bf16.mxu0 0
  %2161 = vmatpush2.bf16.xpose.msra.mxu0 0
  %2162 = vmatprep.subr.bf16.mxu0 0
  %2163 = vmatpush2.bf16.xpose.msra.mxu0 0
  %2164 = vmatprep.mubr.bf16.mxu0 0
  %2165 = vmatmul.mubr.bf16.gmra.mxu0 %v2124
  %v2166 = vpop.f32.mrf.mxu0
  %v2167 = vadd.f32 0.0, %v2166
  %v2168 = vpop.f32.mrf.mxu0
  %v2169 = vpop.f32.mrf.mxu0
  %v2170 = vpop.f32.mrf.mxu0
  %2171 = vdwg.mxu0
  %v2172 = vadd.f32 %v2103, %v2167
  %s2173 = scalar_lea.vmem [#allocation2], 448
  %v2174 = vld [vmem:[%s2173] sm:$0xf]
  %v2175 = vld [vmem:[%s2173 + $0x4] sm:$0xf]
  %v2176 = vld [vmem:[%s2173 + $0x8] sm:$0xf]
  %v2177 = vld [vmem:[%s2173 + $0xc] sm:$0xf]
  %v2178 = vrot.slane %v1902, 4
  %v2179 = vrot.slane %v1903, 3
  %v2180 = vsel %vm242, %v2179, %v2178
  %v2181 = vpack.c.b16 %v2180, %v2180
  %v2186 = vunpack.c.l.b16 %v2174
  %v2187 = vunpack.c.l.b16 %v2175
  %v2188 = vunpack.c.l.b16 %v2176
  %v2189 = vunpack.c.l.b16 %v2177
  %v2190 = vpack.c.b16 %v2187, %v2186
  %v2191 = vpack.c.b16 %v2189, %v2188
  %v2193 = vsel %vm255, %v2181, 0
  %v2196 = vsel %vm255, %v2190, 0
  %v2199 = vsel %vm255, %v2191, 0
  %2201 = vmatprep.subr.bf16.mxu0 0
  %2202 = vmatpush1.bf16.xpose.msra.mxu0 0
  %2203 = vmatprep.subr.bf16.mxu0 0
  %2204 = vmatpush1.bf16.xpose.msra.mxu0 0
  %2205 = vmatprep.subr.bf16.mxu0 0
  %2206 = vmatpush1.bf16.xpose.msra.mxu0 0
  %2207 = vmatprep.subr.bf16.mxu0 0
  %2208 = vmatpush1.bf16.xpose.msra.mxu0 0
  %2209 = vmatprep.subr.bf16.mxu0 0
  %2210 = vmatpush1.bf16.xpose.msra.mxu0 0
  %2211 = vmatprep.subr.bf16.mxu0 0
  %2212 = vmatpush1.bf16.xpose.msra.mxu0 0
  %2213 = vmatprep.subr.bf16.mxu0 0
  %2214 = vmatpush1.bf16.xpose.msra.mxu0 %v2199
  %2215 = vmatprep.subr.bf16.mxu0 0
  %2216 = vmatpush1.bf16.xpose.msra.mxu0 %v2196
  %2217 = vmatprep.subr.bf16.mxu0 0
  %2218 = vmatpush2.bf16.xpose.msra.mxu0 0
  %2219 = vmatprep.subr.bf16.mxu0 0
  %2220 = vmatpush2.bf16.xpose.msra.mxu0 0
  %2221 = vmatprep.subr.bf16.mxu0 0
  %2222 = vmatpush2.bf16.xpose.msra.mxu0 0
  %2223 = vmatprep.subr.bf16.mxu0 0
  %2224 = vmatpush2.bf16.xpose.msra.mxu0 0
  %2225 = vmatprep.subr.bf16.mxu0 0
  %2226 = vmatpush2.bf16.xpose.msra.mxu0 0
  %2227 = vmatprep.subr.bf16.mxu0 0
  %2228 = vmatpush2.bf16.xpose.msra.mxu0 0
  %2229 = vmatprep.subr.bf16.mxu0 0
  %2230 = vmatpush2.bf16.xpose.msra.mxu0 0
  %2231 = vmatprep.subr.bf16.mxu0 0
  %2232 = vmatpush2.bf16.xpose.msra.mxu0 0
  %2233 = vmatprep.mubr.bf16.mxu0 0
  %2234 = vmatmul.mubr.bf16.gmra.mxu0 %v2193
  %v2235 = vpop.f32.mrf.mxu0
  %v2236 = vadd.f32 0.0, %v2235
  %v2237 = vpop.f32.mrf.mxu0
  %v2238 = vpop.f32.mrf.mxu0
  %v2239 = vpop.f32.mrf.mxu0
  %2240 = vdwg.mxu0
  %v2241 = vadd.f32 %v2172, %v2236
  %s2242 = scalar_lea.vmem [#allocation2], 464
  %v2243 = vld [vmem:[%s2242] sm:$0xf]
  %v2244 = vld [vmem:[%s2242 + $0x4] sm:$0xf]
  %v2245 = vld [vmem:[%s2242 + $0x8] sm:$0xf]
  %v2246 = vld [vmem:[%s2242 + $0xc] sm:$0xf]
  %v2247 = vrot.slane %v1902, 5
  %v2248 = vrot.slane %v1903, 4
  %v2249 = vsel %vm242, %v2248, %v2247
  %v2250 = vpack.c.b16 %v2249, %v2249
  %v2255 = vunpack.c.l.b16 %v2243
  %v2256 = vunpack.c.l.b16 %v2244
  %v2257 = vunpack.c.l.b16 %v2245
  %v2258 = vunpack.c.l.b16 %v2246
  %v2259 = vpack.c.b16 %v2256, %v2255
  %v2260 = vpack.c.b16 %v2258, %v2257
  %v2262 = vsel %vm255, %v2250, 0
  %v2265 = vsel %vm255, %v2259, 0
  %v2268 = vsel %vm255, %v2260, 0
  %2270 = vmatprep.subr.bf16.mxu0 0
  %2271 = vmatpush1.bf16.xpose.msra.mxu0 0
  %2272 = vmatprep.subr.bf16.mxu0 0
  %2273 = vmatpush1.bf16.xpose.msra.mxu0 0
  %2274 = vmatprep.subr.bf16.mxu0 0
  %2275 = vmatpush1.bf16.xpose.msra.mxu0 0
  %2276 = vmatprep.subr.bf16.mxu0 0
  %2277 = vmatpush1.bf16.xpose.msra.mxu0 0
  %2278 = vmatprep.subr.bf16.mxu0 0
  %2279 = vmatpush1.bf16.xpose.msra.mxu0 0
  %2280 = vmatprep.subr.bf16.mxu0 0
  %2281 = vmatpush1.bf16.xpose.msra.mxu0 0
  %2282 = vmatprep.subr.bf16.mxu0 0
  %2283 = vmatpush1.bf16.xpose.msra.mxu0 %v2268
  %2284 = vmatprep.subr.bf16.mxu0 0
  %2285 = vmatpush1.bf16.xpose.msra.mxu0 %v2265
  %2286 = vmatprep.subr.bf16.mxu0 0
  %2287 = vmatpush2.bf16.xpose.msra.mxu0 0
  %2288 = vmatprep.subr.bf16.mxu0 0
  %2289 = vmatpush2.bf16.xpose.msra.mxu0 0
  %2290 = vmatprep.subr.bf16.mxu0 0
  %2291 = vmatpush2.bf16.xpose.msra.mxu0 0
  %2292 = vmatprep.subr.bf16.mxu0 0
  %2293 = vmatpush2.bf16.xpose.msra.mxu0 0
  %2294 = vmatprep.subr.bf16.mxu0 0
  %2295 = vmatpush2.bf16.xpose.msra.mxu0 0
  %2296 = vmatprep.subr.bf16.mxu0 0
  %2297 = vmatpush2.bf16.xpose.msra.mxu0 0
  %2298 = vmatprep.subr.bf16.mxu0 0
  %2299 = vmatpush2.bf16.xpose.msra.mxu0 0
  %2300 = vmatprep.subr.bf16.mxu0 0
  %2301 = vmatpush2.bf16.xpose.msra.mxu0 0
  %2302 = vmatprep.mubr.bf16.mxu0 0
  %2303 = vmatmul.mubr.bf16.gmra.mxu0 %v2262
  %v2304 = vpop.f32.mrf.mxu0
  %v2305 = vadd.f32 0.0, %v2304
  %v2306 = vpop.f32.mrf.mxu0
  %v2307 = vpop.f32.mrf.mxu0
  %v2308 = vpop.f32.mrf.mxu0
  %2309 = vdwg.mxu0
  %v2310 = vadd.f32 %v2241, %v2305
  %s2311 = scalar_lea.vmem [#allocation2], 480
  %v2312 = vld [vmem:[%s2311] sm:$0xf]
  %v2313 = vld [vmem:[%s2311 + $0x4] sm:$0xf]
  %v2314 = vld [vmem:[%s2311 + $0x8] sm:$0xf]
  %v2315 = vld [vmem:[%s2311 + $0xc] sm:$0xf]
  %v2316 = vrot.slane %v1902, 6
  %v2317 = vrot.slane %v1903, 5
  %v2318 = vsel %vm242, %v2317, %v2316
  %v2319 = vpack.c.b16 %v2318, %v2318
  %v2324 = vunpack.c.l.b16 %v2312
  %v2325 = vunpack.c.l.b16 %v2313
  %v2326 = vunpack.c.l.b16 %v2314
  %v2327 = vunpack.c.l.b16 %v2315
  %v2328 = vpack.c.b16 %v2325, %v2324
  %v2329 = vpack.c.b16 %v2327, %v2326
  %v2331 = vsel %vm255, %v2319, 0
  %v2334 = vsel %vm255, %v2328, 0
  %v2337 = vsel %vm255, %v2329, 0
  %2339 = vmatprep.subr.bf16.mxu0 0
  %2340 = vmatpush1.bf16.xpose.msra.mxu0 0
  %2341 = vmatprep.subr.bf16.mxu0 0
  %2342 = vmatpush1.bf16.xpose.msra.mxu0 0
  %2343 = vmatprep.subr.bf16.mxu0 0
  %2344 = vmatpush1.bf16.xpose.msra.mxu0 0
  %2345 = vmatprep.subr.bf16.mxu0 0
  %2346 = vmatpush1.bf16.xpose.msra.mxu0 0
  %2347 = vmatprep.subr.bf16.mxu0 0
  %2348 = vmatpush1.bf16.xpose.msra.mxu0 0
  %2349 = vmatprep.subr.bf16.mxu0 0
  %2350 = vmatpush1.bf16.xpose.msra.mxu0 0
  %2351 = vmatprep.subr.bf16.mxu0 0
  %2352 = vmatpush1.bf16.xpose.msra.mxu0 %v2337
  %2353 = vmatprep.subr.bf16.mxu0 0
  %2354 = vmatpush1.bf16.xpose.msra.mxu0 %v2334
  %2355 = vmatprep.subr.bf16.mxu0 0
  %2356 = vmatpush2.bf16.xpose.msra.mxu0 0
  %2357 = vmatprep.subr.bf16.mxu0 0
  %2358 = vmatpush2.bf16.xpose.msra.mxu0 0
  %2359 = vmatprep.subr.bf16.mxu0 0
  %2360 = vmatpush2.bf16.xpose.msra.mxu0 0
  %2361 = vmatprep.subr.bf16.mxu0 0
  %2362 = vmatpush2.bf16.xpose.msra.mxu0 0
  %2363 = vmatprep.subr.bf16.mxu0 0
  %2364 = vmatpush2.bf16.xpose.msra.mxu0 0
  %2365 = vmatprep.subr.bf16.mxu0 0
  %2366 = vmatpush2.bf16.xpose.msra.mxu0 0
  %2367 = vmatprep.subr.bf16.mxu0 0
  %2368 = vmatpush2.bf16.xpose.msra.mxu0 0
  %2369 = vmatprep.subr.bf16.mxu0 0
  %2370 = vmatpush2.bf16.xpose.msra.mxu0 0
  %2371 = vmatprep.mubr.bf16.mxu0 0
  %2372 = vmatmul.mubr.bf16.gmra.mxu0 %v2331
  %v2373 = vpop.f32.mrf.mxu0
  %v2374 = vadd.f32 0.0, %v2373
  %v2375 = vpop.f32.mrf.mxu0
  %v2376 = vpop.f32.mrf.mxu0
  %v2377 = vpop.f32.mrf.mxu0
  %2378 = vdwg.mxu0
  %v2379 = vadd.f32 %v2310, %v2374
  %s2380 = scalar_lea.vmem [#allocation2], 496
  %v2381 = vld [vmem:[%s2380] sm:$0xf]
  %v2382 = vld [vmem:[%s2380 + $0x4] sm:$0xf]
  %v2383 = vld [vmem:[%s2380 + $0x8] sm:$0xf]
  %v2384 = vld [vmem:[%s2380 + $0xc] sm:$0xf]
  %v2385 = vrot.slane %v1902, 7
  %v2386 = vrot.slane %v1903, 6
  %v2387 = vsel %vm242, %v2386, %v2385
  %v2388 = vpack.c.b16 %v2387, %v2387
  %v2393 = vunpack.c.l.b16 %v2381
  %v2394 = vunpack.c.l.b16 %v2382
  %v2395 = vunpack.c.l.b16 %v2383
  %v2396 = vunpack.c.l.b16 %v2384
  %v2397 = vpack.c.b16 %v2394, %v2393
  %v2398 = vpack.c.b16 %v2396, %v2395
  %v2400 = vsel %vm255, %v2388, 0
  %v2403 = vsel %vm255, %v2397, 0
  %v2406 = vsel %vm255, %v2398, 0
  %2408 = vmatprep.subr.bf16.mxu0 0
  %2409 = vmatpush1.bf16.xpose.msra.mxu0 0
  %2410 = vmatprep.subr.bf16.mxu0 0
  %2411 = vmatpush1.bf16.xpose.msra.mxu0 0
  %2412 = vmatprep.subr.bf16.mxu0 0
  %2413 = vmatpush1.bf16.xpose.msra.mxu0 0
  %2414 = vmatprep.subr.bf16.mxu0 0
  %2415 = vmatpush1.bf16.xpose.msra.mxu0 0
  %2416 = vmatprep.subr.bf16.mxu0 0
  %2417 = vmatpush1.bf16.xpose.msra.mxu0 0
  %2418 = vmatprep.subr.bf16.mxu0 0
  %2419 = vmatpush1.bf16.xpose.msra.mxu0 0
  %2420 = vmatprep.subr.bf16.mxu0 0
  %2421 = vmatpush1.bf16.xpose.msra.mxu0 %v2406
  %2422 = vmatprep.subr.bf16.mxu0 0
  %2423 = vmatpush1.bf16.xpose.msra.mxu0 %v2403
  %2424 = vmatprep.subr.bf16.mxu0 0
  %2425 = vmatpush2.bf16.xpose.msra.mxu0 0
  %2426 = vmatprep.subr.bf16.mxu0 0
  %2427 = vmatpush2.bf16.xpose.msra.mxu0 0
  %2428 = vmatprep.subr.bf16.mxu0 0
  %2429 = vmatpush2.bf16.xpose.msra.mxu0 0
  %2430 = vmatprep.subr.bf16.mxu0 0
  %2431 = vmatpush2.bf16.xpose.msra.mxu0 0
  %2432 = vmatprep.subr.bf16.mxu0 0
  %2433 = vmatpush2.bf16.xpose.msra.mxu0 0
  %2434 = vmatprep.subr.bf16.mxu0 0
  %2435 = vmatpush2.bf16.xpose.msra.mxu0 0
  %2436 = vmatprep.subr.bf16.mxu0 0
  %2437 = vmatpush2.bf16.xpose.msra.mxu0 0
  %2438 = vmatprep.subr.bf16.mxu0 0
  %2439 = vmatpush2.bf16.xpose.msra.mxu0 0
  %2440 = vmatprep.mubr.bf16.mxu0 0
  %2441 = vmatmul.mubr.bf16.gmra.mxu0 %v2400
  %v2442 = vpop.f32.mrf.mxu0
  %v2443 = vadd.f32 0.0, %v2442
  %v2444 = vpop.f32.mrf.mxu0
  %v2445 = vpop.f32.mrf.mxu0
  %v2446 = vpop.f32.mrf.mxu0
  %2447 = vdwg.mxu0
  %v2448 = vadd.f32 %v2379, %v2443
  %v2449 = vld [vmem:[%s2] sm:$0x1]
  %v2451 = vlaneseq
  %v2452 = vshrl.u32 %v2451, 7
  %v2453 = vsub.s32 0, %v2452
  %v2454 = vrot.slane %v2449, %v2453
  %v2456 = vadd.f32 %v2448, %v2454
  %v2457 = vmax.f32 %v2456, 0.0
  %2458 = vrot.lane.b32.xlu0 %v2454, 96
  %v2459 = vpop.permute.xlu0 %2458
  %v2461 = vmul.f32 %v2457, %v2459
  %vm2462 = vcmask 254976
  %v2463 = vsel %vm2462, %v2461, 0.0
  %2464 = vadd.xlane.f32.xlu0 %v2463
  %v2465 = vpop.xlane.xlu0 %2464
  %v2466 = vadd.f32 %v2465, %v2454
  %v2467 = vtanh.pop %v2466
  %2469 = vrot.lane.b32.xlu0 %v2467, 64
  %v2470 = vpop.permute.xlu0 %2469
  %vm2472 = vcmask 1024
  %2473 = vst.msk [vmem:[%s4] sm:$0x3] %vm2472, %v2470
  // Predicated region
  $region18: #{value_head_forward.1} parent=0 // pred_check
    _
  $region19: #{value_head_forward.1} parent=0 // pred_check_branch
    %2475 = sbr.rel (0) target = $region21
  $region20: #{value_head_forward.1} parent=0 // pred_region
    _
  $region21: #{value_head_forward.1} parent=0 // pred_fallthru
    _
  // Predicated region
  $region22: #{value_head_forward.1} parent=0 // pred_check
    _
  $region23: #{value_head_forward.1} parent=0 // pred_check_branch
    %2477 = sbr.rel (0) target = $region25
  $region24: #{value_head_forward.1} parent=0 // pred_region
    _
  $region25: #{value_head_forward.1} parent=0 // pred_fallthru
    _
  %2478 = vsyncmov [#allocation3]
  %s2479 = vpop.sfrf %2478
  %p2480 = scmp.eq.s32.totalorder %s2479, 0
  %p2481 = pneg %p2480
  %2483 = shalt.err (%p2481)

</llo_original>
